<compile_context>
chip_gen: v7x
topology: tpu7x:2x2x1
jax: 0.10.0
libtpu: 0.0.40
codegen_flags: <defaults>
</compile_context>

<pallas_src>
from functools import partial

import jax
import jax.numpy as jnp
from jax.experimental import pallas as pl
from jax.experimental.pallas import tpu as pltpu

LANE = 128                           # pad feature dims to the 128-lane vreg width
VMEM_BUDGET = 48 * 1024 * 1024       # target working set (fits v7x's 64 MiB VMEM)
VMEM_LIMIT = 56 * 1024 * 1024        # Mosaic scoped-VMEM cap (v7x-safe)


def _round_up(n, m):
    return -(-n // m) * m


def _pad2d(x, rows, cols):
    r, c = x.shape
    return jnp.pad(x, ((0, rows - r), (0, cols - c)))


# ----------------------------------------------------------------- kernels

def _project(x_self, agg_f32, inv_deg, wcat_ref, b_ref, o_ref, apply_relu):
    """Fused self+neighbor projection: lane-concat -> one K=2*Fp MXU dot.

    (On v5e's 128-wide MXU a split two-dot form is marginally better, but the
    kernel is HBM-bound so the fused form is kept for v6e/v7x's 256-wide MXU.)
    """
    agg = agg_f32 * inv_deg            # exact f32 1/deg scaling (A is binary)
    feats = jnp.concatenate([x_self, agg.astype(x_self.dtype)], axis=-1)
    out = jnp.dot(feats, wcat_ref[...], preferred_element_type=jnp.float32) + b_ref[...]
    if apply_relu:
        out = jnp.maximum(out, 0.0)
    o_ref[...] = out.astype(o_ref.dtype)


def sage_rowtile_kernel(a_ref, x_ref, invdeg_ref, wcat_ref, b_ref, o_ref, *,
                        tile_n, apply_relu):
    """Fast path (tile_k == Np): whole neighbor axis in one MXU contraction."""
    i = pl.program_id(0)
    row0 = pl.multiple_of(i * tile_n, tile_n)
    agg = jnp.dot(a_ref[...], x_ref[...], preferred_element_type=jnp.float32)
    _project(x_ref[pl.ds(row0, tile_n), :], agg, invdeg_ref[...],
             wcat_ref, b_ref, o_ref, apply_relu)


def sage_ktile_kernel(a_ref, x_ref, invdeg_ref, wcat_ref, b_ref, o_ref, agg_ref, *,
                      tile_n, tile_k, apply_relu):
    """Fallback: k-tiled neighbor reduction with an f32 VMEM accumulator."""
    i = pl.program_id(0)
    k = pl.program_id(1)

    @pl.when(k == 0)
    def _init():
        agg_ref[...] = jnp.zeros_like(agg_ref)

    col0 = pl.multiple_of(k * tile_k, tile_k)
    agg_ref[...] += jnp.dot(a_ref[...], x_ref[pl.ds(col0, tile_k), :],
                            preferred_element_type=jnp.float32)

    @pl.when(k == pl.num_programs(1) - 1)
    def _finalize():
        row0 = pl.multiple_of(i * tile_n, tile_n)
        _project(x_ref[pl.ds(row0, tile_n), :], agg_ref[...], invdeg_ref[...],
                 wcat_ref, b_ref, o_ref, apply_relu)


# ----------------------------------------------------------------- wrappers

def _pick_config(N, feat_p, out_bytes):
    """Choose (Np, tile_n, tile_k).

    tile sizes prefer 512 (256-multiples fill the v6e/v7x 256-wide MXU) while
    keeping >= 2 row tiles so the 'parallel' axis shards over v7x's two TCs.
    """
    tile_n = 512
    while tile_n > LANE and -(-N // tile_n) < 2:
        tile_n //= 2
    Np = _round_up(N, tile_n)

    fixed = (2 * Np * feat_p * 2                # resident X (double-buffer budgeted)
             + 2 * (2 * feat_p) * feat_p * 2    # stacked [W_self; W_neigh]
             + 2 * tile_n * feat_p * out_bytes  # output tile (double-buffered)
             + 64 * 1024)                       # bias / inv_deg / slack

    # Preferred: single fused dot per row tile (tile_k == Np) -> no k axis.
    if fixed + 2 * tile_n * Np * 2 <= VMEM_BUDGET:
        return Np, tile_n, Np

    # Fallback: k-tile the neighbor axis with an f32 accumulator.
    tile_k = 512
    while (tile_k > LANE
           and fixed + 2 * tile_n * tile_k * 2 + tile_n * feat_p * 4 > VMEM_BUDGET):
        tile_k //= 2
    Np = _round_up(N, max(tile_n, tile_k))
    # TODO(synk): if resident X itself exceeds the VMEM budget, stream X k-tiles
    # (or switch to a CSR gather) instead of keeping it resident.
    return Np, tile_n, tile_k


def sage_conv(a_bin, x, inv_deg, w_cat, bias, *, apply_relu, out_dtype,
              tile_n, tile_k):
    """One SAGEConv('mean') layer on padded inputs.

    a_bin   : (Np, Np) bf16   binary {0,1} adjacency (exact in bf16)
    x       : (Np, Fp) bf16   node features (kept resident in VMEM)
    inv_deg : (Np, 1)  f32    1 / max(in_deg, 1)
    w_cat   : (2*Fp, Hp) bf16 stacked [W_self ; W_neigh]
    bias    : (1, Hp)  f32
    """
    Np, Fp = x.shape
    Hp = w_cat.shape[1]
    assert Np % tile_n == 0 and Np % tile_k == 0

    if tile_k == Np:
        # Fused single-dot path: no k axis, no accumulator scratch.
        grid_spec = pltpu.PrefetchScalarGridSpec(
            num_scalar_prefetch=0,
            grid=(Np // tile_n,),
            in_specs=[
                pl.BlockSpec((tile_n, Np), lambda i: (i, 0)),    # binary A row strip
                pl.BlockSpec((Np, Fp),     lambda i: (0, 0)),    # X resident in VMEM
                pl.BlockSpec((tile_n, 1),  lambda i: (i, 0)),    # 1/deg (f32)
                pl.BlockSpec((2 * Fp, Hp), lambda i: (0, 0)),    # [W_self ; W_neigh]
                pl.BlockSpec((1, Hp),      lambda i: (0, 0)),    # bias
            ],
            out_specs=pl.BlockSpec((tile_n, Hp), lambda i: (i, 0)),
        )
        kernel = partial(sage_rowtile_kernel, tile_n=tile_n, apply_relu=apply_relu)
        dims = ("parallel",)
    else:
        # k-tiled reduction path; reduction axis last in the grid.
        grid_spec = pltpu.PrefetchScalarGridSpec(
            num_scalar_prefetch=0,
            grid=(Np // tile_n, Np // tile_k),
            in_specs=[
                pl.BlockSpec((tile_n, tile_k), lambda i, k: (i, k)),  # A tile
                pl.BlockSpec((Np, Fp),         lambda i, k: (0, 0)),  # X resident
                pl.BlockSpec((tile_n, 1),      lambda i, k: (i, 0)),  # 1/deg
                pl.BlockSpec((2 * Fp, Hp),     lambda i, k: (0, 0)),  # weights
                pl.BlockSpec((1, Hp),          lambda i, k: (0, 0)),  # bias
            ],
            out_specs=pl.BlockSpec((tile_n, Hp), lambda i, k: (i, 0)),
            scratch_shapes=[pltpu.VMEM((tile_n, Fp), jnp.float32)],   # agg accumulator
        )
        kernel = partial(sage_ktile_kernel, tile_n=tile_n, tile_k=tile_k,
                         apply_relu=apply_relu)
        dims = ("parallel", "arbitrary")

    return pl.pallas_call(
        kernel,
        out_shape=jax.ShapeDtypeStruct((Np, Hp), out_dtype),
        grid_spec=grid_spec,
        compiler_params=pltpu.CompilerParams(
            dimension_semantics=dims,
            vmem_limit_bytes=VMEM_LIMIT,
        ),
    )(a_bin, x, inv_deg, w_cat, bias)


def graphsage_forward(adj, x, params):
    """adj: (N, N) binary {0,1} adjacency; x: (N, F) features.

    DGL SAGEConv('mean'): h = X @ W_self + mean_{j in N(i)} X_j @ W_neigh + b
    conv1 -> ReLU -> conv2.
    """
    N, F = x.shape
    H = params["w_self1"].shape[1]
    Fp = _round_up(F, LANE)
    Hp = _round_up(H, LANE)

    Np, tile_n, tile_k = _pick_config(N, max(Fp, Hp), out_bytes=4)

    deg = jnp.maximum(adj.sum(axis=1, keepdims=True), 1.0)   # zero-deg -> zero agg (DGL)
    inv_deg = _pad2d((1.0 / deg).astype(jnp.float32), Np, 1)

    # Binary adjacency is exact in bf16; the 1/deg scale is applied in f32 inside
    # the kernel, so the mean aggregation has no bf16 edge-weight error.
    # TODO(synk): on v7x, cast the binary adjacency to fp8 (e4m3) to halve the
    # dominant A_norm HBM stream.
    a_p = _pad2d(adj, Np, Np).astype(jnp.bfloat16)
    x_p = _pad2d(x, Np, Fp).astype(jnp.bfloat16)

    w_cat1 = jnp.concatenate(
        [_pad2d(params["w_self1"], Fp, Hp), _pad2d(params["w_neigh1"], Fp, Hp)],
        axis=0).astype(jnp.bfloat16)
    b1 = _pad2d(params["b1"], 1, Hp).astype(jnp.float32)
    w_cat2 = jnp.concatenate(
        [_pad2d(params["w_self2"], Hp, Hp), _pad2d(params["w_neigh2"], Hp, Hp)],
        axis=0).astype(jnp.bfloat16)
    b2 = _pad2d(params["b2"], 1, Hp).astype(jnp.float32)

    h = sage_conv(a_p, x_p, inv_deg, w_cat1, b1, apply_relu=True,
                  out_dtype=jnp.bfloat16, tile_n=tile_n, tile_k=tile_k)   # conv1+relu
    out = sage_conv(a_p, h, inv_deg, w_cat2, b2, apply_relu=False,
                    out_dtype=jnp.float32, tile_n=tile_n, tile_k=tile_k)  # conv2
    return out[:N, :H]


def init_params(key, in_feats, h_feats):
    ks = jax.random.split(key, 6)
    scale1 = 1.0 / jnp.sqrt(in_feats)
    scale2 = 1.0 / jnp.sqrt(h_feats)
    return {
        "w_self1":  jax.random.normal(ks[0], (in_feats, h_feats), jnp.float32) * scale1,
        "w_neigh1": jax.random.normal(ks[1], (in_feats, h_feats), jnp.float32) * scale1,
        "b1":       jnp.zeros((1, h_feats), jnp.float32),
        "w_self2":  jax.random.normal(ks[2], (h_feats, h_feats), jnp.float32) * scale2,
        "w_neigh2": jax.random.normal(ks[3], (h_feats, h_feats), jnp.float32) * scale2,
        "b2":       jnp.zeros((1, h_feats), jnp.float32),
    }


if __name__ == "__main__":
    N, in_feats, h_feats = 256, 32, 32
    key = jax.random.PRNGKey(0)
    k_adj, k_feat, k_param = jax.random.split(key, 3)

    # deterministic random graph (no self loops), binary adjacency
    adj = (jax.random.uniform(k_adj, (N, N)) < 0.2).astype(jnp.float32)
    adj = adj * (1.0 - jnp.eye(N, dtype=jnp.float32))
    x = jax.random.normal(k_feat, (N, in_feats), jnp.float32)
    params = init_params(k_param, in_feats, h_feats)

    fwd = jax.jit(graphsage_forward)
    out = jax.block_until_ready(fwd(adj, x, params))

    # pure-JAX reference mirroring the kernel's bf16 input casts
    # (f32 accumulation, binary A with exact f32 1/deg mean scaling).
    def bf(v):
        return v.astype(jnp.bfloat16).astype(jnp.float32)

    deg = jnp.maximum(adj.sum(axis=1, keepdims=True), 1.0)
    x32 = bf(x)
    ws1, wn1 = bf(params["w_self1"]), bf(params["w_neigh1"])
    ws2, wn2 = bf(params["w_self2"]), bf(params["w_neigh2"])
    h_ref = jnp.maximum(x32 @ ws1 + bf((adj @ x32) / deg) @ wn1 + params["b1"], 0.0)
    h_ref = bf(h_ref)
    ref = h_ref @ ws2 + bf((adj @ h_ref) / deg) @ wn2 + params["b2"]

    assert out.shape == (N, h_feats)
    err = float(jnp.max(jnp.abs(out - ref)))
    assert jnp.allclose(out, ref, atol=2e-2, rtol=2e-2), err
    print("KERNEL_OK")
</pallas_src>

<mosaic_0001>
module attributes {stable_mosaic.version = 11 : i64} {
  func.func @sage_rowtile_kernel(%arg0: i32, %arg1: memref<128x256xbf16, #tpu.memory_space<vmem>>, %arg2: memref<256x128xbf16, #tpu.memory_space<vmem>>, %arg3: memref<128x1xf32, #tpu.memory_space<vmem>>, %arg4: memref<256x128xbf16, #tpu.memory_space<vmem>>, %arg5: memref<1x128xf32, #tpu.memory_space<vmem>>, %arg6: memref<128x128xf32, #tpu.memory_space<vmem>>) attributes {dimension_semantics = [#tpu.dimension_semantics<parallel>], iteration_bounds = array<i64: 2>, scalar_prefetch = 0 : i64, scratch_operands = 0 : i64, tpu.core_type = #tpu.core_type<tc>, window_params = [{transform_indices = @transform_0, window_bounds = array<i64: 128, 256>}, {pipeline_mode = #tpu.pipeline_mode<synchronous>, transform_indices = @transform_1, window_bounds = array<i64: 256, 128>}, {transform_indices = @transform_2, window_bounds = array<i64: 128, 1>}, {pipeline_mode = #tpu.pipeline_mode<synchronous>, transform_indices = @transform_3, window_bounds = array<i64: 256, 128>}, {pipeline_mode = #tpu.pipeline_mode<synchronous>, transform_indices = @transform_4, window_bounds = array<i64: 1, 128>}, {transform_indices = @transform_5, window_bounds = array<i64: 128, 128>}]} {
    %c128_i32 = arith.constant 128 : i32
    %0 = arith.muli %arg0, %c128_i32 : i32
    %1 = tpu.assume_multiple %0, 128 : i32
    %c0 = arith.constant 0 : index
    %c0_0 = arith.constant 0 : index
    %2 = vector.load %arg1[%c0, %c0_0] : memref<128x256xbf16, #tpu.memory_space<vmem>>, vector<128x256xbf16>
    %c0_1 = arith.constant 0 : index
    %c0_2 = arith.constant 0 : index
    %3 = vector.load %arg2[%c0_1, %c0_2] : memref<256x128xbf16, #tpu.memory_space<vmem>>, vector<256x128xbf16>
    %cst = arith.constant dense<0.000000e+00> : vector<128x128xf32>
    %4 = tpu.matmul %2, %3, %cst {dimension_numbers = #tpu.dot_dimension_numbers<[1], [0], [0], [1], [0, 0, 1, 1], [], []>} : vector<128x256xbf16>, vector<256x128xbf16>, vector<128x128xf32> -> vector<128x128xf32>
    %5 = arith.index_cast %1 : i32 to index
    %c0_3 = arith.constant 0 : index
    %6 = vector.load %arg2[%5, %c0_3] : memref<256x128xbf16, #tpu.memory_space<vmem>>, vector<128x128xbf16>
    %c0_4 = arith.constant 0 : index
    %c0_5 = arith.constant 0 : index
    %7 = vector.load %arg3[%c0_4, %c0_5] : memref<128x1xf32, #tpu.memory_space<vmem>>, vector<128x1xf32>
    %8 = vector.broadcast %7 : vector<128x1xf32> to vector<128x128xf32>
    %9 = arith.mulf %4, %8 : vector<128x128xf32>
    %10 = arith.truncf %9 : vector<128x128xf32> to vector<128x128xbf16>
    %11 = tpu.concatenate %6, %10 in 1 : vector<128x128xbf16>, vector<128x128xbf16> -> vector<128x256xbf16>
    %c0_6 = arith.constant 0 : index
    %c0_7 = arith.constant 0 : index
    %12 = vector.load %arg4[%c0_6, %c0_7] : memref<256x128xbf16, #tpu.memory_space<vmem>>, vector<256x128xbf16>
    %cst_8 = arith.constant dense<0.000000e+00> : vector<128x128xf32>
    %13 = tpu.matmul %11, %12, %cst_8 {dimension_numbers = #tpu.dot_dimension_numbers<[1], [0], [0], [1], [0, 0, 1, 1], [], []>} : vector<128x256xbf16>, vector<256x128xbf16>, vector<128x128xf32> -> vector<128x128xf32>
    %c0_9 = arith.constant 0 : index
    %c0_10 = arith.constant 0 : index
    %14 = vector.load %arg5[%c0_9, %c0_10] : memref<1x128xf32, #tpu.memory_space<vmem>>, vector<1x128xf32>
    %15 = vector.broadcast %14 : vector<1x128xf32> to vector<128x128xf32>
    %16 = arith.addf %13, %15 : vector<128x128xf32>
    %c0_11 = arith.constant 0 : index
    %c0_12 = arith.constant 0 : index
    %17 = vector.load %arg6[%c0_11, %c0_12] : memref<128x128xf32, #tpu.memory_space<vmem>>, vector<128x128xf32>
    tpu.vector_store %arg6[%c0_11, %c0_12], %16 {strides = array<i32>} : memref<128x128xf32, #tpu.memory_space<vmem>>, vector<128x128xf32>,
    return
  }
  func.func @transform_0(%arg0: i32) -> (i32, i32) {
    %c0_i32 = arith.constant 0 : i32
    %c0_i32_0 = arith.constant 0 : i32
    return %arg0, %c0_i32 : i32, i32
  }
  func.func @transform_1(%arg0: i32) -> (i32, i32) {
    %c0_i32 = arith.constant 0 : i32
    %c0_i32_0 = arith.constant 0 : i32
    %c0_i32_1 = arith.constant 0 : i32
    return %c0_i32, %c0_i32_0 : i32, i32
  }
  func.func @transform_2(%arg0: i32) -> (i32, i32) {
    %c0_i32 = arith.constant 0 : i32
    %c0_i32_0 = arith.constant 0 : i32
    return %arg0, %c0_i32 : i32, i32
  }
  func.func @transform_3(%arg0: i32) -> (i32, i32) {
    %c0_i32 = arith.constant 0 : i32
    %c0_i32_0 = arith.constant 0 : i32
    %c0_i32_1 = arith.constant 0 : i32
    return %c0_i32, %c0_i32_0 : i32, i32
  }
  func.func @transform_4(%arg0: i32) -> (i32, i32) {
    %c0_i32 = arith.constant 0 : i32
    %c0_i32_0 = arith.constant 0 : i32
    %c0_i32_1 = arith.constant 0 : i32
    return %c0_i32, %c0_i32_0 : i32, i32
  }
  func.func @transform_5(%arg0: i32) -> (i32, i32) {
    %c0_i32 = arith.constant 0 : i32
    %c0_i32_0 = arith.constant 0 : i32
    return %arg0, %c0_i32 : i32, i32
  }
}

module attributes {stable_mosaic.version = 11 : i64} {
  func.func @sage_rowtile_kernel(%arg0: i32, %arg1: memref<128x256xbf16, #tpu.memory_space<vmem>>, %arg2: memref<256x128xbf16, #tpu.memory_space<vmem>>, %arg3: memref<128x1xf32, #tpu.memory_space<vmem>>, %arg4: memref<256x128xbf16, #tpu.memory_space<vmem>>, %arg5: memref<1x128xf32, #tpu.memory_space<vmem>>, %arg6: memref<128x128xbf16, #tpu.memory_space<vmem>>) attributes {dimension_semantics = [#tpu.dimension_semantics<parallel>], iteration_bounds = array<i64: 2>, scalar_prefetch = 0 : i64, scratch_operands = 0 : i64, tpu.core_type = #tpu.core_type<tc>, window_params = [{transform_indices = @transform_0, window_bounds = array<i64: 128, 256>}, {pipeline_mode = #tpu.pipeline_mode<synchronous>, transform_indices = @transform_1, window_bounds = array<i64: 256, 128>}, {transform_indices = @transform_2, window_bounds = array<i64: 128, 1>}, {pipeline_mode = #tpu.pipeline_mode<synchronous>, transform_indices = @transform_3, window_bounds = array<i64: 256, 128>}, {pipeline_mode = #tpu.pipeline_mode<synchronous>, transform_indices = @transform_4, window_bounds = array<i64: 1, 128>}, {transform_indices = @transform_5, window_bounds = array<i64: 128, 128>}]} {
    %c128_i32 = arith.constant 128 : i32
    %0 = arith.muli %arg0, %c128_i32 : i32
    %1 = tpu.assume_multiple %0, 128 : i32
    %c0 = arith.constant 0 : index
    %c0_0 = arith.constant 0 : index
    %2 = vector.load %arg1[%c0, %c0_0] : memref<128x256xbf16, #tpu.memory_space<vmem>>, vector<128x256xbf16>
    %c0_1 = arith.constant 0 : index
    %c0_2 = arith.constant 0 : index
    %3 = vector.load %arg2[%c0_1, %c0_2] : memref<256x128xbf16, #tpu.memory_space<vmem>>, vector<256x128xbf16>
    %cst = arith.constant dense<0.000000e+00> : vector<128x128xf32>
    %4 = tpu.matmul %2, %3, %cst {dimension_numbers = #tpu.dot_dimension_numbers<[1], [0], [0], [1], [0, 0, 1, 1], [], []>} : vector<128x256xbf16>, vector<256x128xbf16>, vector<128x128xf32> -> vector<128x128xf32>
    %5 = arith.index_cast %1 : i32 to index
    %c0_3 = arith.constant 0 : index
    %6 = vector.load %arg2[%5, %c0_3] : memref<256x128xbf16, #tpu.memory_space<vmem>>, vector<128x128xbf16>
    %c0_4 = arith.constant 0 : index
    %c0_5 = arith.constant 0 : index
    %7 = vector.load %arg3[%c0_4, %c0_5] : memref<128x1xf32, #tpu.memory_space<vmem>>, vector<128x1xf32>
    %8 = vector.broadcast %7 : vector<128x1xf32> to vector<128x128xf32>
    %9 = arith.mulf %4, %8 : vector<128x128xf32>
    %10 = arith.truncf %9 : vector<128x128xf32> to vector<128x128xbf16>
    %11 = tpu.concatenate %6, %10 in 1 : vector<128x128xbf16>, vector<128x128xbf16> -> vector<128x256xbf16>
    %c0_6 = arith.constant 0 : index
    %c0_7 = arith.constant 0 : index
    %12 = vector.load %arg4[%c0_6, %c0_7] : memref<256x128xbf16, #tpu.memory_space<vmem>>, vector<256x128xbf16>
    %cst_8 = arith.constant dense<0.000000e+00> : vector<128x128xf32>
    %13 = tpu.matmul %11, %12, %cst_8 {dimension_numbers = #tpu.dot_dimension_numbers<[1], [0], [0], [1], [0, 0, 1, 1], [], []>} : vector<128x256xbf16>, vector<256x128xbf16>, vector<128x128xf32> -> vector<128x128xf32>
    %c0_9 = arith.constant 0 : index
    %c0_10 = arith.constant 0 : index
    %14 = vector.load %arg5[%c0_9, %c0_10] : memref<1x128xf32, #tpu.memory_space<vmem>>, vector<1x128xf32>
    %15 = vector.broadcast %14 : vector<1x128xf32> to vector<128x128xf32>
    %16 = arith.addf %13, %15 : vector<128x128xf32>
    %cst_11 = arith.constant 0.000000e+00 : f32
    %17 = vector.broadcast %cst_11 : f32 to vector<128x128xf32>
    %18 = arith.maximumf %16, %17 : vector<128x128xf32>
    %19 = arith.truncf %18 : vector<128x128xf32> to vector<128x128xbf16>
    %c0_12 = arith.constant 0 : index
    %c0_13 = arith.constant 0 : index
    %20 = vector.load %arg6[%c0_12, %c0_13] : memref<128x128xbf16, #tpu.memory_space<vmem>>, vector<128x128xbf16>
    tpu.vector_store %arg6[%c0_12, %c0_13], %19 {strides = array<i32>} : memref<128x128xbf16, #tpu.memory_space<vmem>>, vector<128x128xbf16>,
    return
  }
  func.func @transform_0(%arg0: i32) -> (i32, i32) {
    %c0_i32 = arith.constant 0 : i32
    %c0_i32_0 = arith.constant 0 : i32
    return %arg0, %c0_i32 : i32, i32
  }
  func.func @transform_1(%arg0: i32) -> (i32, i32) {
    %c0_i32 = arith.constant 0 : i32
    %c0_i32_0 = arith.constant 0 : i32
    %c0_i32_1 = arith.constant 0 : i32
    return %c0_i32, %c0_i32_0 : i32, i32
  }
  func.func @transform_2(%arg0: i32) -> (i32, i32) {
    %c0_i32 = arith.constant 0 : i32
    %c0_i32_0 = arith.constant 0 : i32
    return %arg0, %c0_i32 : i32, i32
  }
  func.func @transform_3(%arg0: i32) -> (i32, i32) {
    %c0_i32 = arith.constant 0 : i32
    %c0_i32_0 = arith.constant 0 : i32
    %c0_i32_1 = arith.constant 0 : i32
    return %c0_i32, %c0_i32_0 : i32, i32
  }
  func.func @transform_4(%arg0: i32) -> (i32, i32) {
    %c0_i32 = arith.constant 0 : i32
    %c0_i32_0 = arith.constant 0 : i32
    %c0_i32_1 = arith.constant 0 : i32
    return %c0_i32, %c0_i32_0 : i32, i32
  }
  func.func @transform_5(%arg0: i32) -> (i32, i32) {
    %c0_i32 = arith.constant 0 : i32
    %c0_i32_0 = arith.constant 0 : i32
    return %arg0, %c0_i32 : i32, i32
  }
}

</mosaic_0001>

<llo_original>
// kernel: graphsage_forward.3
$region0: #{graphsage_forward.3}
  #allocation0 [shape = 'u32[]', space=smem, size = 0x4, offset = 0x4, fixed_abs, tag = 'smem constant byte address 0x4 - core index']
  #allocation1 [shape = 'u32[144,128]{1,0:T(1,128)}', space=vmem, size = 0x12000, scoped, tag = 'internal scratch']
  %s0 = inlined_call_operand.vmem [shape: bf16[256,256], index: 0, kind: input, shape index: {}]
  %s1 = inlined_call_operand.vmem [shape: bf16[256,128], index: 1, kind: input, shape index: {}]
  %s2 = inlined_call_operand.vmem [shape: f32[256,1], index: 2, kind: input, shape index: {}]
  %s3 = inlined_call_operand.vmem [shape: bf16[256,128], index: 3, kind: input, shape index: {}]
  %s4 = inlined_call_operand.vmem [shape: f32[1,128], index: 4, kind: input, shape index: {}]
  %s5 = inlined_call_operand.vmem [shape: f32[256,128], index: 5, kind: output, shape index: {}]
  %s6 = sld [smem:[#allocation0]]
  $region53: #{graphsage_forward.3} parent=0
    _
  %s8 = ssub.s32 1, %s6
  %s9 = scalar_select 0, %s8, %s6
  loop: start=0, step=1, limit=4
  $region2: #{graphsage_forward.3} parent=0 // loop_pre_header
    _
  $region3: #{graphsage_forward.3} parent=0 // loop_header
    %s11 = sphi 0, %s15
    %p12 = scmp.ge.s32.totalorder %s11, 4
    %s21 = sphi 0, %s23
    %s24 = sphi 0, %s21
    %s25 = sphi 0, %s24
    %s41 = sphi 0, %s25
    %s45 = sphi 0, %s45
    %s47 = sphi 0, %s45
    %s48 = sphi 0, %s47
    %s62 = sphi 0, %s48
    %s68 = sphi 0, %s70
    %s71 = sphi 0, %s68
    %s72 = sphi 0, %s71
    %s88 = sphi 0, %s72
    %s92 = sphi 0, %s92
    %s94 = sphi 0, %s92
    %s95 = sphi 0, %s94
    %s109 = sphi 0, %s95
    %s113 = sphi 0, %s113
    %s115 = sphi 0, %s113
    %s116 = sphi 0, %s115
    %s130 = sphi 0, %s116
    %s136 = sphi 0, %s138
    %s139 = sphi 0, %s136
    %s140 = sphi 0, %s139
    %s156 = sphi 0, %s140
  $region4: #{graphsage_forward.3} parent=0 // loop_header_branch
    %14 = sbr.rel (%p12) target = $region8
  $region5: #{graphsage_forward.3} parent=0 // loop_body
    %s16 = ssub.s32 %s11, 1
    %s17 = ssub.s32 %s11, 2
    %s18 = sadd.s32 %s11, 1
    %s19 = ssub.s32 %s11, %s18
    %p20 = scmp.eq.s32.totalorder %s19, 0
    %s22 = sadd.s32 %s21, 1
    %s23 = scalar_select %p20, %s21, %s22
    %p26 = pneg %p20
    %p27 = scmp.eq.s32.totalorder %s11, 1
    %p28 = por %p26, %p27
    %p29 = scmp.ne.s32.totalorder %s21, %s24
    %p30 = scmp.eq.s32.totalorder %s11, 0
    %p31 = por %p29, %p30
    %p32 = scmp.ne.s32.totalorder %s21, %s24
    %p33 = scmp.eq.s32.totalorder %s16, 1
    %p34 = por %p32, %p33
    %p35 = scmp.ne.s32.totalorder %s24, %s25
    %p36 = scmp.eq.s32.totalorder %s16, 0
    %p37 = por %p35, %p36
    %p38 = scmp.ne.s32.totalorder %s24, %s25
    %p39 = scmp.eq.s32.totalorder %s17, 1
    %p40 = por %p38, %p39
    %p42 = scmp.ne.s32.totalorder %s25, %s41
    %p43 = scmp.eq.s32.totalorder %s17, 0
    %p44 = por %p42, %p43
    %s46 = sadd.s32 %s45, 1
    %p49 = scmp.eq.s32.totalorder %s11, 1
    %p50 = scmp.ne.s32.totalorder %s45, %s47
    %p51 = scmp.eq.s32.totalorder %s11, 0
    %p52 = por %p50, %p51
    %p53 = scmp.ne.s32.totalorder %s45, %s47
    %p54 = scmp.eq.s32.totalorder %s16, 1
    %p55 = por %p53, %p54
    %p56 = scmp.ne.s32.totalorder %s47, %s48
    %p57 = scmp.eq.s32.totalorder %s16, 0
    %p58 = por %p56, %p57
    %p59 = scmp.ne.s32.totalorder %s47, %s48
    %p60 = scmp.eq.s32.totalorder %s17, 1
    %p61 = por %p59, %p60
    %p63 = scmp.ne.s32.totalorder %s48, %s62
    %p64 = scmp.eq.s32.totalorder %s17, 0
    %p65 = por %p63, %p64
    %s66 = ssub.s32 %s11, %s18
    %p67 = scmp.eq.s32.totalorder %s66, 0
    %s69 = sadd.s32 %s68, 1
    %s70 = scalar_select %p67, %s68, %s69
    %p73 = pneg %p67
    %p74 = scmp.eq.s32.totalorder %s11, 1
    %p75 = por %p73, %p74
    %p76 = scmp.ne.s32.totalorder %s68, %s71
    %p77 = scmp.eq.s32.totalorder %s11, 0
    %p78 = por %p76, %p77
    %p79 = scmp.ne.s32.totalorder %s68, %s71
    %p80 = scmp.eq.s32.totalorder %s16, 1
    %p81 = por %p79, %p80
    %p82 = scmp.ne.s32.totalorder %s71, %s72
    %p83 = scmp.eq.s32.totalorder %s16, 0
    %p84 = por %p82, %p83
    %p85 = scmp.ne.s32.totalorder %s71, %s72
    %p86 = scmp.eq.s32.totalorder %s17, 1
    %p87 = por %p85, %p86
    %p89 = scmp.ne.s32.totalorder %s72, %s88
    %p90 = scmp.eq.s32.totalorder %s17, 0
    %p91 = por %p89, %p90
    %s93 = sadd.s32 %s92, 1
    %p96 = scmp.eq.s32.totalorder %s11, 1
    %p97 = scmp.ne.s32.totalorder %s92, %s94
    %p98 = scmp.eq.s32.totalorder %s11, 0
    %p99 = por %p97, %p98
    %p100 = scmp.ne.s32.totalorder %s92, %s94
    %p101 = scmp.eq.s32.totalorder %s16, 1
    %p102 = por %p100, %p101
    %p103 = scmp.ne.s32.totalorder %s94, %s95
    %p104 = scmp.eq.s32.totalorder %s16, 0
    %p105 = por %p103, %p104
    %p106 = scmp.ne.s32.totalorder %s94, %s95
    %p107 = scmp.eq.s32.totalorder %s17, 1
    %p108 = por %p106, %p107
    %p110 = scmp.ne.s32.totalorder %s95, %s109
    %p111 = scmp.eq.s32.totalorder %s17, 0
    %p112 = por %p110, %p111
    %s114 = sadd.s32 %s113, 1
    %p117 = scmp.eq.s32.totalorder %s11, 1
    %p118 = scmp.ne.s32.totalorder %s113, %s115
    %p119 = scmp.eq.s32.totalorder %s11, 0
    %p120 = por %p118, %p119
    %p121 = scmp.ne.s32.totalorder %s113, %s115
    %p122 = scmp.eq.s32.totalorder %s16, 1
    %p123 = por %p121, %p122
    %p124 = scmp.ne.s32.totalorder %s115, %s116
    %p125 = scmp.eq.s32.totalorder %s16, 0
    %p126 = por %p124, %p125
    %p127 = scmp.ne.s32.totalorder %s115, %s116
    %p128 = scmp.eq.s32.totalorder %s17, 1
    %p129 = por %p127, %p128
    %p131 = scmp.ne.s32.totalorder %s116, %s130
    %p132 = scmp.eq.s32.totalorder %s17, 0
    %p133 = por %p131, %p132
    %s134 = ssub.s32 %s11, %s18
    %p135 = scmp.eq.s32.totalorder %s134, 0
    %s137 = sadd.s32 %s136, 1
    %s138 = scalar_select %p135, %s136, %s137
    %p141 = pneg %p135
    %p142 = scmp.eq.s32.totalorder %s11, 1
    %p143 = por %p141, %p142
    %p144 = scmp.ne.s32.totalorder %s136, %s139
    %p145 = scmp.eq.s32.totalorder %s11, 0
    %p146 = por %p144, %p145
    %p147 = scmp.ne.s32.totalorder %s136, %s139
    %p148 = scmp.eq.s32.totalorder %s16, 1
    %p149 = por %p147, %p148
    %p150 = scmp.ne.s32.totalorder %s139, %s140
    %p151 = scmp.eq.s32.totalorder %s16, 0
    %p152 = por %p150, %p151
    %p153 = scmp.ne.s32.totalorder %s139, %s140
    %p154 = scmp.eq.s32.totalorder %s17, 1
    %p155 = por %p153, %p154
    %p157 = scmp.ne.s32.totalorder %s140, %s156
    %p158 = scmp.eq.s32.totalorder %s17, 0
    %p159 = por %p157, %p158
    %p160 = scmp.le.s32.totalorder 1, %s11
    %p161 = scmp.lt.s32.totalorder %s11, 3
    %p162 = pnand %p160, %p161
    %p163 = pneg %p162
    // Predicated region
    $region9: #{graphsage_forward.3} parent=5 // pred_check
      _
    $region10: #{graphsage_forward.3} parent=5 // pred_check_branch
      %165 = sbr.rel (%p162) target = $region12
    $region11: #{graphsage_forward.3} parent=5 // pred_region
      %s166 = ssub.s32 %s11, 1
      // Predicated region
      $region13: #{graphsage_forward.3} parent=11 // pred_check
        %p167 = pneg %p58
      $region14: #{graphsage_forward.3} parent=11 // pred_check_branch
        %169 = sbr.rel (%p167) target = $region16
      $region15: #{graphsage_forward.3} parent=11 // pred_region
        _
      $region16: #{graphsage_forward.3} parent=11 // pred_fallthru
        _
      // Predicated region
      $region17: #{graphsage_forward.3} parent=11 // pred_check
        %p170 = pneg %p105
      $region18: #{graphsage_forward.3} parent=11 // pred_check_branch
        %172 = sbr.rel (%p170) target = $region20
      $region19: #{graphsage_forward.3} parent=11 // pred_region
        _
      $region20: #{graphsage_forward.3} parent=11 // pred_fallthru
        _
      // Predicated region
      $region21: #{graphsage_forward.3} parent=11 // pred_check
        %p173 = pneg %p126
      $region22: #{graphsage_forward.3} parent=11 // pred_check_branch
        %175 = sbr.rel (%p173) target = $region24
      $region23: #{graphsage_forward.3} parent=11 // pred_region
        _
      $region24: #{graphsage_forward.3} parent=11 // pred_fallthru
        _
    $region12: #{graphsage_forward.3} parent=5 // pred_fallthru
      _
    %p176 = scmp.lt.s32.totalorder %s11, 2
    // Predicated region
    $region25: #{graphsage_forward.3} parent=5 // pred_check
      %p177 = pneg %p176
    $region26: #{graphsage_forward.3} parent=5 // pred_check_branch
      %179 = sbr.rel (%p177) target = $region28
    $region27: #{graphsage_forward.3} parent=5 // pred_region
      // Predicated region
      $region29: #{graphsage_forward.3} parent=27 // pred_check
        %p180 = pneg %p31
      $region30: #{graphsage_forward.3} parent=27 // pred_check_branch
        %182 = sbr.rel (%p180) target = $region32
      $region31: #{graphsage_forward.3} parent=27 // pred_region
        %s183 = smul.u32 16, %s11
        %p184 = scmp.lt.s32.totalorder %s183, 31
        %s185 = scalar_select %p184, %s183, 31
        %s186 = smul.addr %s185, 2
        %s187 = smul.addr %s186, 4
        %s188 = scalar_lea.vmem %s0, %s187
        %s189 = smul.u32 16, %s11
      $region32: #{graphsage_forward.3} parent=27 // pred_fallthru
        _
      // Predicated region
      $region33: #{graphsage_forward.3} parent=27 // pred_check
        %p190 = pneg %p78
      $region34: #{graphsage_forward.3} parent=27 // pred_check_branch
        %192 = sbr.rel (%p190) target = $region36
      $region35: #{graphsage_forward.3} parent=27 // pred_region
        %s193 = smul.u32 16, %s11
        %p194 = scmp.lt.s32.totalorder %s193, 31
        %s195 = scalar_select %p194, %s193, 31
        %s196 = smul.addr %s195, 8
        %s197 = scalar_lea.vmem %s2, %s196
        %s198 = smul.u32 16, %s11
      $region36: #{graphsage_forward.3} parent=27 // pred_fallthru
        _
    $region28: #{graphsage_forward.3} parent=5 // pred_fallthru
      _
    %p199 = scmp.le.s32.totalorder 1, %s11
    %p200 = scmp.lt.s32.totalorder %s11, 3
    %p201 = pnand %p199, %p200
    %p202 = pneg %p201
    // Predicated region
    $region37: #{graphsage_forward.3} parent=5 // pred_check
      _
    $region38: #{graphsage_forward.3} parent=5 // pred_check_branch
      %204 = sbr.rel (%p201) target = $region40
    $region39: #{graphsage_forward.3} parent=5 // pred_region
      %s205 = ssub.s32 %s11, 1
      %s206 = smul.u32 16, %s16
      %p207 = scmp.lt.s32.totalorder %s206, 31
      %s208 = scalar_select %p207, %s206, 31
      %s209 = smul.addr %s208, 2
      %s210 = smul.addr %s209, 4
      %s211 = scalar_lea.vmem %s0, %s210
      %p212 = pneg %p37
      %p213 = pneg %p34
      %p214 = pneg %p58
      %p215 = pneg %p55
      %s216 = smul.u32 16, %s16
      %p217 = scmp.lt.s32.totalorder %s216, 31
      %s218 = scalar_select %p217, %s216, 31
      %s219 = smul.addr %s218, 8
      %s220 = scalar_lea.vmem %s2, %s219
      %p221 = pneg %p84
      %p222 = pneg %p81
      %p223 = pneg %p105
      %p224 = pneg %p102
      %p225 = pneg %p126
      %p226 = pneg %p123
      %p227 = pneg %p152
      %p228 = pneg %p149
      %s229 = smul.u32 16, %s16
      %p230 = scmp.lt.s32.totalorder %s229, 31
      %s231 = scalar_select %p230, %s229, 31
      %s232 = smul.addr %s231, 8
      %s233 = scalar_lea.vmem %s5, %s232
      %s234 = smul.u32 16, %s16
      %p235 = scmp.lt.s32.totalorder %s234, 31
      %s236 = scalar_select %p235, %s234, 31
      %s237 = smul.addr %s236, 2
      %s238 = smul.addr %s237, 4
      %s239 = scalar_lea.vmem %s0, %s238
      %s240 = smul.u32 16, %s16
      %s241 = smul.u32 16, %s16
      %p242 = scmp.lt.s32.totalorder %s241, 31
      %s243 = scalar_select %p242, %s241, 31
      %s244 = smul.addr %s243, 8
      %s245 = scalar_lea.vmem %s2, %s244
      %s246 = smul.u32 16, %s16
      %s247 = smul.u32 16, %s16
      %p248 = scmp.lt.s32.totalorder %s247, 31
      %s249 = scalar_select %p248, %s247, 31
      %s250 = smul.addr %s249, 8
      %s251 = scalar_lea.vmem %s5, %s250
      %s252 = smul.u32 16, %s16
      %s254 = smul.u32 %s16, 128
      %v255 = vld [vmem:[%s239] sm:$0xff]
      %v256 = vld [vmem:[%s239 + $0x8] sm:$0xff]
      %v257 = vld [vmem:[%s239 + $0x10] sm:$0xff]
      %v258 = vld [vmem:[%s239 + $0x18] sm:$0xff]
      %v259 = vld [vmem:[%s239 + $0x20] sm:$0xff]
      %v260 = vld [vmem:[%s239 + $0x28] sm:$0xff]
      %v261 = vld [vmem:[%s239 + $0x30] sm:$0xff]
      %v262 = vld [vmem:[%s239 + $0x38] sm:$0xff]
      %v263 = vld [vmem:[%s239 + $0x40] sm:$0xff]
      %v264 = vld [vmem:[%s239 + $0x48] sm:$0xff]
      %v265 = vld [vmem:[%s239 + $0x50] sm:$0xff]
      %v266 = vld [vmem:[%s239 + $0x58] sm:$0xff]
      %v267 = vld [vmem:[%s239 + $0x60] sm:$0xff]
      %v268 = vld [vmem:[%s239 + $0x68] sm:$0xff]
      %v269 = vld [vmem:[%s239 + $0x70] sm:$0xff]
      %v270 = vld [vmem:[%s239 + $0x78] sm:$0xff]
      %v271 = vld [vmem:[%s1] sm:$0xf]
      %v272 = vld [vmem:[%s1 + $0x4] sm:$0xf]
      %v273 = vld [vmem:[%s1 + $0x8] sm:$0xf]
      %v274 = vld [vmem:[%s1 + $0xc] sm:$0xf]
      %v275 = vld [vmem:[%s1 + $0x10] sm:$0xf]
      %v276 = vld [vmem:[%s1 + $0x14] sm:$0xf]
      %v277 = vld [vmem:[%s1 + $0x18] sm:$0xf]
      %v278 = vld [vmem:[%s1 + $0x1c] sm:$0xf]
      %v279 = vld [vmem:[%s1 + $0x20] sm:$0xf]
      %v280 = vld [vmem:[%s1 + $0x24] sm:$0xf]
      %v281 = vld [vmem:[%s1 + $0x28] sm:$0xf]
      %v282 = vld [vmem:[%s1 + $0x2c] sm:$0xf]
      %v283 = vld [vmem:[%s1 + $0x30] sm:$0xf]
      %v284 = vld [vmem:[%s1 + $0x34] sm:$0xf]
      %v285 = vld [vmem:[%s1 + $0x38] sm:$0xf]
      %v286 = vld [vmem:[%s1 + $0x3c] sm:$0xf]
      %v287 = vld [vmem:[%s1 + $0x40] sm:$0xf]
      %v288 = vld [vmem:[%s1 + $0x44] sm:$0xf]
      %v289 = vld [vmem:[%s1 + $0x48] sm:$0xf]
      %v290 = vld [vmem:[%s1 + $0x4c] sm:$0xf]
      %v291 = vld [vmem:[%s1 + $0x50] sm:$0xf]
      %v292 = vld [vmem:[%s1 + $0x54] sm:$0xf]
      %v293 = vld [vmem:[%s1 + $0x58] sm:$0xf]
      %v294 = vld [vmem:[%s1 + $0x5c] sm:$0xf]
      %v295 = vld [vmem:[%s1 + $0x60] sm:$0xf]
      %v296 = vld [vmem:[%s1 + $0x64] sm:$0xf]
      %v297 = vld [vmem:[%s1 + $0x68] sm:$0xf]
      %v298 = vld [vmem:[%s1 + $0x6c] sm:$0xf]
      %v299 = vld [vmem:[%s1 + $0x70] sm:$0xf]
      %v300 = vld [vmem:[%s1 + $0x74] sm:$0xf]
      %v301 = vld [vmem:[%s1 + $0x78] sm:$0xf]
      %v302 = vld [vmem:[%s1 + $0x7c] sm:$0xf]
      %v319 = vunpack.c.l.b16 %v255
      %v320 = vunpack.c.h.b16 %v255
      %v321 = vunpack.c.l.b16 %v256
      %v322 = vunpack.c.h.b16 %v256
      %v323 = vunpack.c.l.b16 %v257
      %v324 = vunpack.c.h.b16 %v257
      %v325 = vunpack.c.l.b16 %v258
      %v326 = vunpack.c.h.b16 %v258
      %v327 = vunpack.c.l.b16 %v259
      %v328 = vunpack.c.h.b16 %v259
      %v329 = vunpack.c.l.b16 %v260
      %v330 = vunpack.c.h.b16 %v260
      %v331 = vunpack.c.l.b16 %v261
      %v332 = vunpack.c.h.b16 %v261
      %v333 = vunpack.c.l.b16 %v262
      %v334 = vunpack.c.h.b16 %v262
      %v335 = vunpack.c.l.b16 %v263
      %v336 = vunpack.c.h.b16 %v263
      %v337 = vunpack.c.l.b16 %v264
      %v338 = vunpack.c.h.b16 %v264
      %v339 = vunpack.c.l.b16 %v265
      %v340 = vunpack.c.h.b16 %v265
      %v341 = vunpack.c.l.b16 %v266
      %v342 = vunpack.c.h.b16 %v266
      %v343 = vunpack.c.l.b16 %v267
      %v344 = vunpack.c.h.b16 %v267
      %v345 = vunpack.c.l.b16 %v268
      %v346 = vunpack.c.h.b16 %v268
      %v347 = vunpack.c.l.b16 %v269
      %v348 = vunpack.c.h.b16 %v269
      %v349 = vunpack.c.l.b16 %v270
      %v350 = vunpack.c.h.b16 %v270
      %v351 = vpack.c.b16 %v321, %v319
      %v352 = vpack.c.b16 %v322, %v320
      %v353 = vpack.c.b16 %v325, %v323
      %v354 = vpack.c.b16 %v326, %v324
      %v355 = vpack.c.b16 %v329, %v327
      %v356 = vpack.c.b16 %v330, %v328
      %v357 = vpack.c.b16 %v333, %v331
      %v358 = vpack.c.b16 %v334, %v332
      %v359 = vpack.c.b16 %v337, %v335
      %v360 = vpack.c.b16 %v338, %v336
      %v361 = vpack.c.b16 %v341, %v339
      %v362 = vpack.c.b16 %v342, %v340
      %v363 = vpack.c.b16 %v345, %v343
      %v364 = vpack.c.b16 %v346, %v344
      %v365 = vpack.c.b16 %v349, %v347
      %v366 = vpack.c.b16 %v350, %v348
      %v415 = vunpack.c.l.b16 %v271
      %v416 = vunpack.c.l.b16 %v272
      %v417 = vunpack.c.l.b16 %v273
      %v418 = vunpack.c.l.b16 %v274
      %v419 = vunpack.c.l.b16 %v275
      %v420 = vunpack.c.l.b16 %v276
      %v421 = vunpack.c.l.b16 %v277
      %v422 = vunpack.c.l.b16 %v278
      %v423 = vunpack.c.l.b16 %v279
      %v424 = vunpack.c.l.b16 %v280
      %v425 = vunpack.c.l.b16 %v281
      %v426 = vunpack.c.l.b16 %v282
      %v427 = vunpack.c.l.b16 %v283
      %v428 = vunpack.c.l.b16 %v284
      %v429 = vunpack.c.l.b16 %v285
      %v430 = vunpack.c.l.b16 %v286
      %v431 = vunpack.c.l.b16 %v287
      %v432 = vunpack.c.l.b16 %v288
      %v433 = vunpack.c.l.b16 %v289
      %v434 = vunpack.c.l.b16 %v290
      %v435 = vunpack.c.l.b16 %v291
      %v436 = vunpack.c.l.b16 %v292
      %v437 = vunpack.c.l.b16 %v293
      %v438 = vunpack.c.l.b16 %v294
      %v439 = vunpack.c.l.b16 %v295
      %v440 = vunpack.c.l.b16 %v296
      %v441 = vunpack.c.l.b16 %v297
      %v442 = vunpack.c.l.b16 %v298
      %v443 = vunpack.c.l.b16 %v299
      %v444 = vunpack.c.l.b16 %v300
      %v445 = vunpack.c.l.b16 %v301
      %v446 = vunpack.c.l.b16 %v302
      %v447 = vpack.c.b16 %v416, %v415
      %v448 = vpack.c.b16 %v418, %v417
      %v449 = vpack.c.b16 %v420, %v419
      %v450 = vpack.c.b16 %v422, %v421
      %v451 = vpack.c.b16 %v424, %v423
      %v452 = vpack.c.b16 %v426, %v425
      %v453 = vpack.c.b16 %v428, %v427
      %v454 = vpack.c.b16 %v430, %v429
      %v455 = vpack.c.b16 %v432, %v431
      %v456 = vpack.c.b16 %v434, %v433
      %v457 = vpack.c.b16 %v436, %v435
      %v458 = vpack.c.b16 %v438, %v437
      %v459 = vpack.c.b16 %v440, %v439
      %v460 = vpack.c.b16 %v442, %v441
      %v461 = vpack.c.b16 %v444, %v443
      %v462 = vpack.c.b16 %v446, %v445
      %479 = vmatprep.subr.bf16.mxu0 0
      %480 = vmatpush1.bf16.msra.mxu0 %v447
      %481 = vmatprep.subr.bf16.mxu0 0
      %482 = vmatpush1.bf16.msra.mxu0 %v448
      %483 = vmatprep.subr.bf16.mxu0 0
      %484 = vmatpush1.bf16.msra.mxu0 %v449
      %485 = vmatprep.subr.bf16.mxu0 0
      %486 = vmatpush1.bf16.msra.mxu0 %v450
      %487 = vmatprep.subr.bf16.mxu0 0
      %488 = vmatpush1.bf16.msra.mxu0 %v451
      %489 = vmatprep.subr.bf16.mxu0 0
      %490 = vmatpush1.bf16.msra.mxu0 %v452
      %491 = vmatprep.subr.bf16.mxu0 0
      %492 = vmatpush1.bf16.msra.mxu0 %v453
      %493 = vmatprep.subr.bf16.mxu0 0
      %494 = vmatpush1.bf16.msra.mxu0 %v454
      %495 = vmatprep.subr.bf16.mxu0 0
      %496 = vmatpush1.bf16.msra.mxu0 %v455
      %497 = vmatprep.subr.bf16.mxu0 0
      %498 = vmatpush1.bf16.msra.mxu0 %v456
      %499 = vmatprep.subr.bf16.mxu0 0
      %500 = vmatpush1.bf16.msra.mxu0 %v457
      %501 = vmatprep.subr.bf16.mxu0 0
      %502 = vmatpush1.bf16.msra.mxu0 %v458
      %503 = vmatprep.subr.bf16.mxu0 0
      %504 = vmatpush1.bf16.msra.mxu0 %v459
      %505 = vmatprep.subr.bf16.mxu0 0
      %506 = vmatpush1.bf16.msra.mxu0 %v460
      %507 = vmatprep.subr.bf16.mxu0 0
      %508 = vmatpush1.bf16.msra.mxu0 %v461
      %509 = vmatprep.subr.bf16.mxu0 0
      %510 = vmatpush1.bf16.msra.mxu0 %v462
      %511 = vmatprep.mubr.bf16.mxu0 %v352
      %512 = vmatmul.mubr.bf16.gmra.mrb[0].mxu0 %v351
      %v513 = vpop.f32.mrb[0].mxu0
      %v514 = vadd.f32 0.0, %v513
      %v515 = vpop.f32.mrb[0].mxu0
      %v516 = vpop.f32.mrb[0].mxu0
      %v517 = vadd.f32 0.0, %v516
      %v518 = vpop.f32.mrb[0].mxu0
      %519 = vmatprep.mubr.bf16.mxu0 %v354
      %520 = vmatmul.mubr.bf16.gmra.mrb[0].mxu0 %v353
      %v521 = vpop.f32.mrb[0].mxu0
      %v522 = vadd.f32 0.0, %v521
      %v523 = vpop.f32.mrb[0].mxu0
      %v524 = vpop.f32.mrb[0].mxu0
      %v525 = vadd.f32 0.0, %v524
      %v526 = vpop.f32.mrb[0].mxu0
      %527 = vmatprep.mubr.bf16.mxu0 %v356
      %528 = vmatmul.mubr.bf16.gmra.mrb[0].mxu0 %v355
      %v529 = vpop.f32.mrb[0].mxu0
      %v530 = vadd.f32 0.0, %v529
      %v531 = vpop.f32.mrb[0].mxu0
      %v532 = vpop.f32.mrb[0].mxu0
      %v533 = vadd.f32 0.0, %v532
      %v534 = vpop.f32.mrb[0].mxu0
      %535 = vmatprep.mubr.bf16.mxu0 %v358
      %536 = vmatmul.mubr.bf16.gmra.mrb[0].mxu0 %v357
      %v537 = vpop.f32.mrb[0].mxu0
      %v538 = vadd.f32 0.0, %v537
      %v539 = vpop.f32.mrb[0].mxu0
      %v540 = vpop.f32.mrb[0].mxu0
      %v541 = vadd.f32 0.0, %v540
      %v542 = vpop.f32.mrb[0].mxu0
      %543 = vmatprep.mubr.bf16.mxu0 %v360
      %544 = vmatmul.mubr.bf16.gmra.mrb[0].mxu0 %v359
      %v545 = vpop.f32.mrb[0].mxu0
      %v546 = vadd.f32 0.0, %v545
      %v547 = vpop.f32.mrb[0].mxu0
      %v548 = vpop.f32.mrb[0].mxu0
      %v549 = vadd.f32 0.0, %v548
      %v550 = vpop.f32.mrb[0].mxu0
      %551 = vmatprep.mubr.bf16.mxu0 %v362
      %552 = vmatmul.mubr.bf16.gmra.mrb[0].mxu0 %v361
      %v553 = vpop.f32.mrb[0].mxu0
      %v554 = vadd.f32 0.0, %v553
      %v555 = vpop.f32.mrb[0].mxu0
      %v556 = vpop.f32.mrb[0].mxu0
      %v557 = vadd.f32 0.0, %v556
      %v558 = vpop.f32.mrb[0].mxu0
      %559 = vmatprep.mubr.bf16.mxu0 %v364
      %560 = vmatmul.mubr.bf16.gmra.mrb[0].mxu0 %v363
      %v561 = vpop.f32.mrb[0].mxu0
      %v562 = vadd.f32 0.0, %v561
      %v563 = vpop.f32.mrb[0].mxu0
      %v564 = vpop.f32.mrb[0].mxu0
      %v565 = vadd.f32 0.0, %v564
      %v566 = vpop.f32.mrb[0].mxu0
      %567 = vmatprep.mubr.bf16.mxu0 %v366
      %568 = vmatmul.mubr.bf16.gmra.mrb[0].mxu0 %v365
      %v569 = vpop.f32.mrb[0].mxu0
      %v570 = vadd.f32 0.0, %v569
      %v571 = vpop.f32.mrb[0].mxu0
      %v572 = vpop.f32.mrb[0].mxu0
      %v573 = vadd.f32 0.0, %v572
      %v574 = vpop.f32.mrb[0].mxu0
      %575 = vdwg.mxu0
      %s576 = sshra.s32 %s254, 3
      %s577 = sand.u32 %s254, 7
      %s578 = smul.addr %s576, 4
      %s579 = scalar_lea.vmem %s1, %s578
      %v580 = vld [vmem:[%s579] sm:$0xf]
      %v581 = vld [vmem:[%s579 + $0x4] sm:$0xf]
      %v582 = vld [vmem:[%s579 + $0x8] sm:$0xf]
      %v583 = vld [vmem:[%s579 + $0xc] sm:$0xf]
      %v584 = vld [vmem:[%s579 + $0x10] sm:$0xf]
      %v585 = vld [vmem:[%s579 + $0x14] sm:$0xf]
      %v586 = vld [vmem:[%s579 + $0x18] sm:$0xf]
      %v587 = vld [vmem:[%s579 + $0x1c] sm:$0xf]
      %v588 = vld [vmem:[%s579 + $0x20] sm:$0xf]
      %v589 = vld [vmem:[%s579 + $0x24] sm:$0xf]
      %v590 = vld [vmem:[%s579 + $0x28] sm:$0xf]
      %v591 = vld [vmem:[%s579 + $0x2c] sm:$0xf]
      %v592 = vld [vmem:[%s579 + $0x30] sm:$0xf]
      %v593 = vld [vmem:[%s579 + $0x34] sm:$0xf]
      %v594 = vld [vmem:[%s579 + $0x38] sm:$0xf]
      %v595 = vld [vmem:[%s579 + $0x3c] sm:$0xf]
      %v596 = vld [vmem:[%s245] sm:$0xff]
      %v597 = vld [vmem:[%s245 + $0x8] sm:$0xff]
      %v598 = vld [vmem:[%s245 + $0x10] sm:$0xff]
      %v599 = vld [vmem:[%s245 + $0x18] sm:$0xff]
      %v600 = vld [vmem:[%s245 + $0x20] sm:$0xff]
      %v601 = vld [vmem:[%s245 + $0x28] sm:$0xff]
      %v602 = vld [vmem:[%s245 + $0x30] sm:$0xff]
      %v603 = vld [vmem:[%s245 + $0x38] sm:$0xff]
      %v604 = vld [vmem:[%s245 + $0x40] sm:$0xff]
      %v605 = vld [vmem:[%s245 + $0x48] sm:$0xff]
      %v606 = vld [vmem:[%s245 + $0x50] sm:$0xff]
      %v607 = vld [vmem:[%s245 + $0x58] sm:$0xff]
      %v608 = vld [vmem:[%s245 + $0x60] sm:$0xff]
      %v609 = vld [vmem:[%s245 + $0x68] sm:$0xff]
      %v610 = vld [vmem:[%s245 + $0x70] sm:$0xff]
      %v611 = vld [vmem:[%s245 + $0x78] sm:$0xff]
      %613 = vset.pattern.permute.xlu0 0
      %614 = vperm.xlu0 %613, %v596
      %v615 = vpop.permute.xlu0 %614
      %618 = vset.pattern.permute.xlu0 0
      %619 = vperm.xlu0 %618, %v597
      %v620 = vpop.permute.xlu0 %619
      %623 = vset.pattern.permute.xlu0 0
      %624 = vperm.xlu0 %623, %v598
      %v625 = vpop.permute.xlu0 %624
      %628 = vset.pattern.permute.xlu0 0
      %629 = vperm.xlu0 %628, %v599
      %v630 = vpop.permute.xlu0 %629
      %633 = vset.pattern.permute.xlu0 0
      %634 = vperm.xlu0 %633, %v600
      %v635 = vpop.permute.xlu0 %634
      %638 = vset.pattern.permute.xlu0 0
      %639 = vperm.xlu0 %638, %v601
      %v640 = vpop.permute.xlu0 %639
      %643 = vset.pattern.permute.xlu0 0
      %644 = vperm.xlu0 %643, %v602
      %v645 = vpop.permute.xlu0 %644
      %648 = vset.pattern.permute.xlu0 0
      %649 = vperm.xlu0 %648, %v603
      %v650 = vpop.permute.xlu0 %649
      %653 = vset.pattern.permute.xlu0 0
      %654 = vperm.xlu0 %653, %v604
      %v655 = vpop.permute.xlu0 %654
      %658 = vset.pattern.permute.xlu0 0
      %659 = vperm.xlu0 %658, %v605
      %v660 = vpop.permute.xlu0 %659
      %663 = vset.pattern.permute.xlu0 0
      %664 = vperm.xlu0 %663, %v606
      %v665 = vpop.permute.xlu0 %664
      %668 = vset.pattern.permute.xlu0 0
      %669 = vperm.xlu0 %668, %v607
      %v670 = vpop.permute.xlu0 %669
      %673 = vset.pattern.permute.xlu0 0
      %674 = vperm.xlu0 %673, %v608
      %v675 = vpop.permute.xlu0 %674
      %678 = vset.pattern.permute.xlu0 0
      %679 = vperm.xlu0 %678, %v609
      %v680 = vpop.permute.xlu0 %679
      %683 = vset.pattern.permute.xlu0 0
      %684 = vperm.xlu0 %683, %v610
      %v685 = vpop.permute.xlu0 %684
      %688 = vset.pattern.permute.xlu0 0
      %689 = vperm.xlu0 %688, %v611
      %v690 = vpop.permute.xlu0 %689
      %v692 = vmul.f32 %v514, %v615
      %v693 = vmul.f32 %v517, %v620
      %v694 = vmul.f32 %v522, %v625
      %v695 = vmul.f32 %v525, %v630
      %v696 = vmul.f32 %v530, %v635
      %v697 = vmul.f32 %v533, %v640
      %v698 = vmul.f32 %v538, %v645
      %v699 = vmul.f32 %v541, %v650
      %v700 = vmul.f32 %v546, %v655
      %v701 = vmul.f32 %v549, %v660
      %v702 = vmul.f32 %v554, %v665
      %v703 = vmul.f32 %v557, %v670
      %v704 = vmul.f32 %v562, %v675
      %v705 = vmul.f32 %v565, %v680
      %v706 = vmul.f32 %v570, %v685
      %v707 = vmul.f32 %v573, %v690
      %v708 = vpack.c.bf16 %v693, %v692
      %v709 = vpack.c.bf16 %v695, %v694
      %v710 = vpack.c.bf16 %v697, %v696
      %v711 = vpack.c.bf16 %v699, %v698
      %v712 = vpack.c.bf16 %v701, %v700
      %v713 = vpack.c.bf16 %v703, %v702
      %v714 = vpack.c.bf16 %v705, %v704
      %v715 = vpack.c.bf16 %v707, %v706
      %v732 = vunpack.c.l.b16 %v580
      %v733 = vunpack.c.l.b16 %v581
      %v734 = vunpack.c.l.b16 %v582
      %v735 = vunpack.c.l.b16 %v583
      %v736 = vunpack.c.l.b16 %v584
      %v737 = vunpack.c.l.b16 %v585
      %v738 = vunpack.c.l.b16 %v586
      %v739 = vunpack.c.l.b16 %v587
      %v740 = vunpack.c.l.b16 %v588
      %v741 = vunpack.c.l.b16 %v589
      %v742 = vunpack.c.l.b16 %v590
      %v743 = vunpack.c.l.b16 %v591
      %v744 = vunpack.c.l.b16 %v592
      %v745 = vunpack.c.l.b16 %v593
      %v746 = vunpack.c.l.b16 %v594
      %v747 = vunpack.c.l.b16 %v595
      %v748 = vpack.c.b16 %v733, %v732
      %v749 = vpack.c.b16 %v735, %v734
      %v750 = vpack.c.b16 %v737, %v736
      %v751 = vpack.c.b16 %v739, %v738
      %v752 = vpack.c.b16 %v741, %v740
      %v753 = vpack.c.b16 %v743, %v742
      %v754 = vpack.c.b16 %v745, %v744
      %v755 = vpack.c.b16 %v747, %v746
      %v764 = vld [vmem:[%s3] sm:$0xf]
      %v765 = vld [vmem:[%s3 + $0x4] sm:$0xf]
      %v766 = vld [vmem:[%s3 + $0x8] sm:$0xf]
      %v767 = vld [vmem:[%s3 + $0xc] sm:$0xf]
      %v768 = vld [vmem:[%s3 + $0x10] sm:$0xf]
      %v769 = vld [vmem:[%s3 + $0x14] sm:$0xf]
      %v770 = vld [vmem:[%s3 + $0x18] sm:$0xf]
      %v771 = vld [vmem:[%s3 + $0x1c] sm:$0xf]
      %v772 = vld [vmem:[%s3 + $0x20] sm:$0xf]
      %v773 = vld [vmem:[%s3 + $0x24] sm:$0xf]
      %v774 = vld [vmem:[%s3 + $0x28] sm:$0xf]
      %v775 = vld [vmem:[%s3 + $0x2c] sm:$0xf]
      %v776 = vld [vmem:[%s3 + $0x30] sm:$0xf]
      %v777 = vld [vmem:[%s3 + $0x34] sm:$0xf]
      %v778 = vld [vmem:[%s3 + $0x38] sm:$0xf]
      %v779 = vld [vmem:[%s3 + $0x3c] sm:$0xf]
      %v780 = vld [vmem:[%s3 + $0x40] sm:$0xf]
      %v781 = vld [vmem:[%s3 + $0x44] sm:$0xf]
      %v782 = vld [vmem:[%s3 + $0x48] sm:$0xf]
      %v783 = vld [vmem:[%s3 + $0x4c] sm:$0xf]
      %v784 = vld [vmem:[%s3 + $0x50] sm:$0xf]
      %v785 = vld [vmem:[%s3 + $0x54] sm:$0xf]
      %v786 = vld [vmem:[%s3 + $0x58] sm:$0xf]
      %v787 = vld [vmem:[%s3 + $0x5c] sm:$0xf]
      %v788 = vld [vmem:[%s3 + $0x60] sm:$0xf]
      %v789 = vld [vmem:[%s3 + $0x64] sm:$0xf]
      %v790 = vld [vmem:[%s3 + $0x68] sm:$0xf]
      %v791 = vld [vmem:[%s3 + $0x6c] sm:$0xf]
      %v792 = vld [vmem:[%s3 + $0x70] sm:$0xf]
      %v793 = vld [vmem:[%s3 + $0x74] sm:$0xf]
      %v794 = vld [vmem:[%s3 + $0x78] sm:$0xf]
      %v795 = vld [vmem:[%s3 + $0x7c] sm:$0xf]
      %v796 = vld [vmem:[%s4] sm:$0x1]
      %v798 = vlaneseq
      %v799 = vshrl.u32 %v798, 7
      %v800 = vsub.s32 0, %v799
      %v801 = vrot.slane %v796, %v800
      %v835 = vunpack.c.l.b16 %v764
      %v836 = vunpack.c.l.b16 %v765
      %v837 = vunpack.c.l.b16 %v766
      %v838 = vunpack.c.l.b16 %v767
      %v839 = vunpack.c.l.b16 %v768
      %v840 = vunpack.c.l.b16 %v769
      %v841 = vunpack.c.l.b16 %v770
      %v842 = vunpack.c.l.b16 %v771
      %v843 = vunpack.c.l.b16 %v772
      %v844 = vunpack.c.l.b16 %v773
      %v845 = vunpack.c.l.b16 %v774
      %v846 = vunpack.c.l.b16 %v775
      %v847 = vunpack.c.l.b16 %v776
      %v848 = vunpack.c.l.b16 %v777
      %v849 = vunpack.c.l.b16 %v778
      %v850 = vunpack.c.l.b16 %v779
      %v851 = vunpack.c.l.b16 %v780
      %v852 = vunpack.c.l.b16 %v781
      %v853 = vunpack.c.l.b16 %v782
      %v854 = vunpack.c.l.b16 %v783
      %v855 = vunpack.c.l.b16 %v784
      %v856 = vunpack.c.l.b16 %v785
      %v857 = vunpack.c.l.b16 %v786
      %v858 = vunpack.c.l.b16 %v787
      %v859 = vunpack.c.l.b16 %v788
      %v860 = vunpack.c.l.b16 %v789
      %v861 = vunpack.c.l.b16 %v790
      %v862 = vunpack.c.l.b16 %v791
      %v863 = vunpack.c.l.b16 %v792
      %v864 = vunpack.c.l.b16 %v793
      %v865 = vunpack.c.l.b16 %v794
      %v866 = vunpack.c.l.b16 %v795
      %v867 = vpack.c.b16 %v836, %v835
      %v868 = vpack.c.b16 %v838, %v837
      %v869 = vpack.c.b16 %v840, %v839
      %v870 = vpack.c.b16 %v842, %v841
      %v871 = vpack.c.b16 %v844, %v843
      %v872 = vpack.c.b16 %v846, %v845
      %v873 = vpack.c.b16 %v848, %v847
      %v874 = vpack.c.b16 %v850, %v849
      %v875 = vpack.c.b16 %v852, %v851
      %v876 = vpack.c.b16 %v854, %v853
      %v877 = vpack.c.b16 %v856, %v855
      %v878 = vpack.c.b16 %v858, %v857
      %v879 = vpack.c.b16 %v860, %v859
      %v880 = vpack.c.b16 %v862, %v861
      %v881 = vpack.c.b16 %v864, %v863
      %v882 = vpack.c.b16 %v866, %v865
      %899 = vmatprep.subr.bf16.mxu0 0
      %900 = vmatpush1.bf16.msra.mxu0 %v867
      %901 = vmatprep.subr.bf16.mxu0 0
      %902 = vmatpush1.bf16.msra.mxu0 %v868
      %903 = vmatprep.subr.bf16.mxu0 0
      %904 = vmatpush1.bf16.msra.mxu0 %v869
      %905 = vmatprep.subr.bf16.mxu0 0
      %906 = vmatpush1.bf16.msra.mxu0 %v870
      %907 = vmatprep.subr.bf16.mxu0 0
      %908 = vmatpush1.bf16.msra.mxu0 %v871
      %909 = vmatprep.subr.bf16.mxu0 0
      %910 = vmatpush1.bf16.msra.mxu0 %v872
      %911 = vmatprep.subr.bf16.mxu0 0
      %912 = vmatpush1.bf16.msra.mxu0 %v873
      %913 = vmatprep.subr.bf16.mxu0 0
      %914 = vmatpush1.bf16.msra.mxu0 %v874
      %915 = vmatprep.subr.bf16.mxu0 0
      %916 = vmatpush1.bf16.msra.mxu0 %v875
      %917 = vmatprep.subr.bf16.mxu0 0
      %918 = vmatpush1.bf16.msra.mxu0 %v876
      %919 = vmatprep.subr.bf16.mxu0 0
      %920 = vmatpush1.bf16.msra.mxu0 %v877
      %921 = vmatprep.subr.bf16.mxu0 0
      %922 = vmatpush1.bf16.msra.mxu0 %v878
      %923 = vmatprep.subr.bf16.mxu0 0
      %924 = vmatpush1.bf16.msra.mxu0 %v879
      %925 = vmatprep.subr.bf16.mxu0 0
      %926 = vmatpush1.bf16.msra.mxu0 %v880
      %927 = vmatprep.subr.bf16.mxu0 0
      %928 = vmatpush1.bf16.msra.mxu0 %v881
      %929 = vmatprep.subr.bf16.mxu0 0
      %930 = vmatpush1.bf16.msra.mxu0 %v882
      %931 = vmatprep.mubr.bf16.mxu0 %v708
      %932 = vmatmul.mubr.bf16.gmra.mrb[0].mxu0 %v748
      %v933 = vpop.f32.mrb[0].mxu0
      %v934 = vadd.f32 %v801, %v933
      %v935 = vpop.f32.mrb[0].mxu0
      %v936 = vpop.f32.mrb[0].mxu0
      %v937 = vadd.f32 %v801, %v936
      %v938 = vpop.f32.mrb[0].mxu0
      %939 = vmatprep.mubr.bf16.mxu0 %v709
      %940 = vmatmul.mubr.bf16.gmra.mrb[0].mxu0 %v749
      %v941 = vpop.f32.mrb[0].mxu0
      %v942 = vadd.f32 %v801, %v941
      %v943 = vpop.f32.mrb[0].mxu0
      %v944 = vpop.f32.mrb[0].mxu0
      %v945 = vadd.f32 %v801, %v944
      %v946 = vpop.f32.mrb[0].mxu0
      %947 = vmatprep.mubr.bf16.mxu0 %v710
      %948 = vmatmul.mubr.bf16.gmra.mrb[0].mxu0 %v750
      %v949 = vpop.f32.mrb[0].mxu0
      %v950 = vadd.f32 %v801, %v949
      %v951 = vpop.f32.mrb[0].mxu0
      %v952 = vpop.f32.mrb[0].mxu0
      %v953 = vadd.f32 %v801, %v952
      %v954 = vpop.f32.mrb[0].mxu0
      %955 = vmatprep.mubr.bf16.mxu0 %v711
      %956 = vmatmul.mubr.bf16.gmra.mrb[0].mxu0 %v751
      %v957 = vpop.f32.mrb[0].mxu0
      %v958 = vadd.f32 %v801, %v957
      %v959 = vpop.f32.mrb[0].mxu0
      %v960 = vpop.f32.mrb[0].mxu0
      %v961 = vadd.f32 %v801, %v960
      %v962 = vpop.f32.mrb[0].mxu0
      %963 = vmatprep.mubr.bf16.mxu0 %v712
      %964 = vmatmul.mubr.bf16.gmra.mrb[0].mxu0 %v752
      %v965 = vpop.f32.mrb[0].mxu0
      %v966 = vadd.f32 %v801, %v965
      %v967 = vpop.f32.mrb[0].mxu0
      %v968 = vpop.f32.mrb[0].mxu0
      %v969 = vadd.f32 %v801, %v968
      %v970 = vpop.f32.mrb[0].mxu0
      %971 = vmatprep.mubr.bf16.mxu0 %v713
      %972 = vmatmul.mubr.bf16.gmra.mrb[0].mxu0 %v753
      %v973 = vpop.f32.mrb[0].mxu0
      %v974 = vadd.f32 %v801, %v973
      %v975 = vpop.f32.mrb[0].mxu0
      %v976 = vpop.f32.mrb[0].mxu0
      %v977 = vadd.f32 %v801, %v976
      %v978 = vpop.f32.mrb[0].mxu0
      %979 = vmatprep.mubr.bf16.mxu0 %v714
      %980 = vmatmul.mubr.bf16.gmra.mrb[0].mxu0 %v754
      %v981 = vpop.f32.mrb[0].mxu0
      %v982 = vadd.f32 %v801, %v981
      %v983 = vpop.f32.mrb[0].mxu0
      %v984 = vpop.f32.mrb[0].mxu0
      %v985 = vadd.f32 %v801, %v984
      %v986 = vpop.f32.mrb[0].mxu0
      %987 = vmatprep.mubr.bf16.mxu0 %v715
      %988 = vmatmul.mubr.bf16.gmra.mrb[0].mxu0 %v755
      %v989 = vpop.f32.mrb[0].mxu0
      %v990 = vadd.f32 %v801, %v989
      %v991 = vpop.f32.mrb[0].mxu0
      %v992 = vpop.f32.mrb[0].mxu0
      %v993 = vadd.f32 %v801, %v992
      %v994 = vpop.f32.mrb[0].mxu0
      %995 = vdwg.mxu0
      %996 = vst [vmem:[%s251] sm:$0xff] %v934
      %997 = vst [vmem:[%s251 + $0x8] sm:$0xff] %v937
      %998 = vst [vmem:[%s251 + $0x10] sm:$0xff] %v942
      %999 = vst [vmem:[%s251 + $0x18] sm:$0xff] %v945
      %1000 = vst [vmem:[%s251 + $0x20] sm:$0xff] %v950
      %1001 = vst [vmem:[%s251 + $0x28] sm:$0xff] %v953
      %1002 = vst [vmem:[%s251 + $0x30] sm:$0xff] %v958
      %1003 = vst [vmem:[%s251 + $0x38] sm:$0xff] %v961
      %1004 = vst [vmem:[%s251 + $0x40] sm:$0xff] %v966
      %1005 = vst [vmem:[%s251 + $0x48] sm:$0xff] %v969
      %1006 = vst [vmem:[%s251 + $0x50] sm:$0xff] %v974
      %1007 = vst [vmem:[%s251 + $0x58] sm:$0xff] %v977
      %1008 = vst [vmem:[%s251 + $0x60] sm:$0xff] %v982
      %1009 = vst [vmem:[%s251 + $0x68] sm:$0xff] %v985
      %1010 = vst [vmem:[%s251 + $0x70] sm:$0xff] %v990
      %1011 = vst [vmem:[%s251 + $0x78] sm:$0xff] %v993
      %s1012 = smul.u32 16, %s16
      %p1013 = scmp.lt.s32.totalorder %s1012, 31
      %s1014 = scalar_select %p1013, %s1012, 31
      %s1015 = smul.addr %s1014, 8
      %s1016 = scalar_lea.vmem %s5, %s1015
      // Predicated region
      $region41: #{graphsage_forward.3} parent=39 // pred_check
        %p1017 = pneg %p149
      $region42: #{graphsage_forward.3} parent=39 // pred_check_branch
        %1019 = sbr.rel (%p1017) target = $region44
      $region43: #{graphsage_forward.3} parent=39 // pred_region
        %s1020 = smul.u32 16, %s16
      $region44: #{graphsage_forward.3} parent=39 // pred_fallthru
        _
    $region40: #{graphsage_forward.3} parent=5 // pred_fallthru
      _
    %p1021 = scmp.le.s32.totalorder 2, %s11
    // Predicated region
    $region45: #{graphsage_forward.3} parent=5 // pred_check
      %p1022 = pneg %p1021
    $region46: #{graphsage_forward.3} parent=5 // pred_check_branch
      %1024 = sbr.rel (%p1022) target = $region48
    $region47: #{graphsage_forward.3} parent=5 // pred_region
      %s1025 = ssub.s32 %s11, 2
      // Predicated region
      $region49: #{graphsage_forward.3} parent=47 // pred_check
        %p1026 = pneg %p155
      $region50: #{graphsage_forward.3} parent=47 // pred_check_branch
        %1028 = sbr.rel (%p1026) target = $region52
      $region51: #{graphsage_forward.3} parent=47 // pred_region
        %s1029 = smul.u32 16, %s17
        %p1030 = scmp.lt.s32.totalorder %s1029, 31
        %s1031 = scalar_select %p1030, %s1029, 31
        %s1032 = smul.addr %s1031, 8
        %s1033 = scalar_lea.vmem %s5, %s1032
      $region52: #{graphsage_forward.3} parent=47 // pred_fallthru
        _
    $region48: #{graphsage_forward.3} parent=5 // pred_fallthru
      _
  $region6: #{graphsage_forward.3} parent=0 // loop_footer
    %s15 = sadd.s32 1, %s11
  $region7: #{graphsage_forward.3} parent=0 // loop_footer_branch
    %10 = sbr.rel target = $region3
  $region8: #{graphsage_forward.3} parent=0 // loop_exit
    _

// kernel: graphsage_forward.2
$region0: #{graphsage_forward.2}
  #allocation0 [shape = 'u32[]', space=smem, size = 0x4, offset = 0x4, fixed_abs, tag = 'smem constant byte address 0x4 - core index']
  #allocation1 [shape = 'u32[144,128]{1,0:T(1,128)}', space=vmem, size = 0x12000, scoped, tag = 'internal scratch']
  %s0 = inlined_call_operand.vmem [shape: bf16[256,256], index: 0, kind: input, shape index: {}]
  %s1 = inlined_call_operand.vmem [shape: bf16[256,128], index: 1, kind: input, shape index: {}]
  %s2 = inlined_call_operand.vmem [shape: f32[256,1], index: 2, kind: input, shape index: {}]
  %s3 = inlined_call_operand.vmem [shape: bf16[256,128], index: 3, kind: input, shape index: {}]
  %s4 = inlined_call_operand.vmem [shape: f32[1,128], index: 4, kind: input, shape index: {}]
  %s5 = inlined_call_operand.vmem [shape: bf16[256,128], index: 5, kind: output, shape index: {}]
  %s6 = sld [smem:[#allocation0]]
  $region53: #{graphsage_forward.2} parent=0
    _
  %s8 = ssub.s32 1, %s6
  %s9 = scalar_select 0, %s8, %s6
  loop: start=0, step=1, limit=4
  $region2: #{graphsage_forward.2} parent=0 // loop_pre_header
    _
  $region3: #{graphsage_forward.2} parent=0 // loop_header
    %s11 = sphi 0, %s15
    %p12 = scmp.ge.s32.totalorder %s11, 4
    %s21 = sphi 0, %s23
    %s24 = sphi 0, %s21
    %s25 = sphi 0, %s24
    %s41 = sphi 0, %s25
    %s45 = sphi 0, %s45
    %s47 = sphi 0, %s45
    %s48 = sphi 0, %s47
    %s62 = sphi 0, %s48
    %s68 = sphi 0, %s70
    %s71 = sphi 0, %s68
    %s72 = sphi 0, %s71
    %s88 = sphi 0, %s72
    %s92 = sphi 0, %s92
    %s94 = sphi 0, %s92
    %s95 = sphi 0, %s94
    %s109 = sphi 0, %s95
    %s113 = sphi 0, %s113
    %s115 = sphi 0, %s113
    %s116 = sphi 0, %s115
    %s130 = sphi 0, %s116
    %s136 = sphi 0, %s138
    %s139 = sphi 0, %s136
    %s140 = sphi 0, %s139
    %s156 = sphi 0, %s140
  $region4: #{graphsage_forward.2} parent=0 // loop_header_branch
    %14 = sbr.rel (%p12) target = $region8
  $region5: #{graphsage_forward.2} parent=0 // loop_body
    %s16 = ssub.s32 %s11, 1
    %s17 = ssub.s32 %s11, 2
    %s18 = sadd.s32 %s11, 1
    %s19 = ssub.s32 %s11, %s18
    %p20 = scmp.eq.s32.totalorder %s19, 0
    %s22 = sadd.s32 %s21, 1
    %s23 = scalar_select %p20, %s21, %s22
    %p26 = pneg %p20
    %p27 = scmp.eq.s32.totalorder %s11, 1
    %p28 = por %p26, %p27
    %p29 = scmp.ne.s32.totalorder %s21, %s24
    %p30 = scmp.eq.s32.totalorder %s11, 0
    %p31 = por %p29, %p30
    %p32 = scmp.ne.s32.totalorder %s21, %s24
    %p33 = scmp.eq.s32.totalorder %s16, 1
    %p34 = por %p32, %p33
    %p35 = scmp.ne.s32.totalorder %s24, %s25
    %p36 = scmp.eq.s32.totalorder %s16, 0
    %p37 = por %p35, %p36
    %p38 = scmp.ne.s32.totalorder %s24, %s25
    %p39 = scmp.eq.s32.totalorder %s17, 1
    %p40 = por %p38, %p39
    %p42 = scmp.ne.s32.totalorder %s25, %s41
    %p43 = scmp.eq.s32.totalorder %s17, 0
    %p44 = por %p42, %p43
    %s46 = sadd.s32 %s45, 1
    %p49 = scmp.eq.s32.totalorder %s11, 1
    %p50 = scmp.ne.s32.totalorder %s45, %s47
    %p51 = scmp.eq.s32.totalorder %s11, 0
    %p52 = por %p50, %p51
    %p53 = scmp.ne.s32.totalorder %s45, %s47
    %p54 = scmp.eq.s32.totalorder %s16, 1
    %p55 = por %p53, %p54
    %p56 = scmp.ne.s32.totalorder %s47, %s48
    %p57 = scmp.eq.s32.totalorder %s16, 0
    %p58 = por %p56, %p57
    %p59 = scmp.ne.s32.totalorder %s47, %s48
    %p60 = scmp.eq.s32.totalorder %s17, 1
    %p61 = por %p59, %p60
    %p63 = scmp.ne.s32.totalorder %s48, %s62
    %p64 = scmp.eq.s32.totalorder %s17, 0
    %p65 = por %p63, %p64
    %s66 = ssub.s32 %s11, %s18
    %p67 = scmp.eq.s32.totalorder %s66, 0
    %s69 = sadd.s32 %s68, 1
    %s70 = scalar_select %p67, %s68, %s69
    %p73 = pneg %p67
    %p74 = scmp.eq.s32.totalorder %s11, 1
    %p75 = por %p73, %p74
    %p76 = scmp.ne.s32.totalorder %s68, %s71
    %p77 = scmp.eq.s32.totalorder %s11, 0
    %p78 = por %p76, %p77
    %p79 = scmp.ne.s32.totalorder %s68, %s71
    %p80 = scmp.eq.s32.totalorder %s16, 1
    %p81 = por %p79, %p80
    %p82 = scmp.ne.s32.totalorder %s71, %s72
    %p83 = scmp.eq.s32.totalorder %s16, 0
    %p84 = por %p82, %p83
    %p85 = scmp.ne.s32.totalorder %s71, %s72
    %p86 = scmp.eq.s32.totalorder %s17, 1
    %p87 = por %p85, %p86
    %p89 = scmp.ne.s32.totalorder %s72, %s88
    %p90 = scmp.eq.s32.totalorder %s17, 0
    %p91 = por %p89, %p90
    %s93 = sadd.s32 %s92, 1
    %p96 = scmp.eq.s32.totalorder %s11, 1
    %p97 = scmp.ne.s32.totalorder %s92, %s94
    %p98 = scmp.eq.s32.totalorder %s11, 0
    %p99 = por %p97, %p98
    %p100 = scmp.ne.s32.totalorder %s92, %s94
    %p101 = scmp.eq.s32.totalorder %s16, 1
    %p102 = por %p100, %p101
    %p103 = scmp.ne.s32.totalorder %s94, %s95
    %p104 = scmp.eq.s32.totalorder %s16, 0
    %p105 = por %p103, %p104
    %p106 = scmp.ne.s32.totalorder %s94, %s95
    %p107 = scmp.eq.s32.totalorder %s17, 1
    %p108 = por %p106, %p107
    %p110 = scmp.ne.s32.totalorder %s95, %s109
    %p111 = scmp.eq.s32.totalorder %s17, 0
    %p112 = por %p110, %p111
    %s114 = sadd.s32 %s113, 1
    %p117 = scmp.eq.s32.totalorder %s11, 1
    %p118 = scmp.ne.s32.totalorder %s113, %s115
    %p119 = scmp.eq.s32.totalorder %s11, 0
    %p120 = por %p118, %p119
    %p121 = scmp.ne.s32.totalorder %s113, %s115
    %p122 = scmp.eq.s32.totalorder %s16, 1
    %p123 = por %p121, %p122
    %p124 = scmp.ne.s32.totalorder %s115, %s116
    %p125 = scmp.eq.s32.totalorder %s16, 0
    %p126 = por %p124, %p125
    %p127 = scmp.ne.s32.totalorder %s115, %s116
    %p128 = scmp.eq.s32.totalorder %s17, 1
    %p129 = por %p127, %p128
    %p131 = scmp.ne.s32.totalorder %s116, %s130
    %p132 = scmp.eq.s32.totalorder %s17, 0
    %p133 = por %p131, %p132
    %s134 = ssub.s32 %s11, %s18
    %p135 = scmp.eq.s32.totalorder %s134, 0
    %s137 = sadd.s32 %s136, 1
    %s138 = scalar_select %p135, %s136, %s137
    %p141 = pneg %p135
    %p142 = scmp.eq.s32.totalorder %s11, 1
    %p143 = por %p141, %p142
    %p144 = scmp.ne.s32.totalorder %s136, %s139
    %p145 = scmp.eq.s32.totalorder %s11, 0
    %p146 = por %p144, %p145
    %p147 = scmp.ne.s32.totalorder %s136, %s139
    %p148 = scmp.eq.s32.totalorder %s16, 1
    %p149 = por %p147, %p148
    %p150 = scmp.ne.s32.totalorder %s139, %s140
    %p151 = scmp.eq.s32.totalorder %s16, 0
    %p152 = por %p150, %p151
    %p153 = scmp.ne.s32.totalorder %s139, %s140
    %p154 = scmp.eq.s32.totalorder %s17, 1
    %p155 = por %p153, %p154
    %p157 = scmp.ne.s32.totalorder %s140, %s156
    %p158 = scmp.eq.s32.totalorder %s17, 0
    %p159 = por %p157, %p158
    %p160 = scmp.le.s32.totalorder 1, %s11
    %p161 = scmp.lt.s32.totalorder %s11, 3
    %p162 = pnand %p160, %p161
    %p163 = pneg %p162
    // Predicated region
    $region9: #{graphsage_forward.2} parent=5 // pred_check
      _
    $region10: #{graphsage_forward.2} parent=5 // pred_check_branch
      %165 = sbr.rel (%p162) target = $region12
    $region11: #{graphsage_forward.2} parent=5 // pred_region
      %s166 = ssub.s32 %s11, 1
      // Predicated region
      $region13: #{graphsage_forward.2} parent=11 // pred_check
        %p167 = pneg %p58
      $region14: #{graphsage_forward.2} parent=11 // pred_check_branch
        %169 = sbr.rel (%p167) target = $region16
      $region15: #{graphsage_forward.2} parent=11 // pred_region
        _
      $region16: #{graphsage_forward.2} parent=11 // pred_fallthru
        _
      // Predicated region
      $region17: #{graphsage_forward.2} parent=11 // pred_check
        %p170 = pneg %p105
      $region18: #{graphsage_forward.2} parent=11 // pred_check_branch
        %172 = sbr.rel (%p170) target = $region20
      $region19: #{graphsage_forward.2} parent=11 // pred_region
        _
      $region20: #{graphsage_forward.2} parent=11 // pred_fallthru
        _
      // Predicated region
      $region21: #{graphsage_forward.2} parent=11 // pred_check
        %p173 = pneg %p126
      $region22: #{graphsage_forward.2} parent=11 // pred_check_branch
        %175 = sbr.rel (%p173) target = $region24
      $region23: #{graphsage_forward.2} parent=11 // pred_region
        _
      $region24: #{graphsage_forward.2} parent=11 // pred_fallthru
        _
    $region12: #{graphsage_forward.2} parent=5 // pred_fallthru
      _
    %p176 = scmp.lt.s32.totalorder %s11, 2
    // Predicated region
    $region25: #{graphsage_forward.2} parent=5 // pred_check
      %p177 = pneg %p176
    $region26: #{graphsage_forward.2} parent=5 // pred_check_branch
      %179 = sbr.rel (%p177) target = $region28
    $region27: #{graphsage_forward.2} parent=5 // pred_region
      // Predicated region
      $region29: #{graphsage_forward.2} parent=27 // pred_check
        %p180 = pneg %p31
      $region30: #{graphsage_forward.2} parent=27 // pred_check_branch
        %182 = sbr.rel (%p180) target = $region32
      $region31: #{graphsage_forward.2} parent=27 // pred_region
        %s183 = smul.u32 16, %s11
        %p184 = scmp.lt.s32.totalorder %s183, 31
        %s185 = scalar_select %p184, %s183, 31
        %s186 = smul.addr %s185, 2
        %s187 = smul.addr %s186, 4
        %s188 = scalar_lea.vmem %s0, %s187
        %s189 = smul.u32 16, %s11
      $region32: #{graphsage_forward.2} parent=27 // pred_fallthru
        _
      // Predicated region
      $region33: #{graphsage_forward.2} parent=27 // pred_check
        %p190 = pneg %p78
      $region34: #{graphsage_forward.2} parent=27 // pred_check_branch
        %192 = sbr.rel (%p190) target = $region36
      $region35: #{graphsage_forward.2} parent=27 // pred_region
        %s193 = smul.u32 16, %s11
        %p194 = scmp.lt.s32.totalorder %s193, 31
        %s195 = scalar_select %p194, %s193, 31
        %s196 = smul.addr %s195, 8
        %s197 = scalar_lea.vmem %s2, %s196
        %s198 = smul.u32 16, %s11
      $region36: #{graphsage_forward.2} parent=27 // pred_fallthru
        _
    $region28: #{graphsage_forward.2} parent=5 // pred_fallthru
      _
    %p199 = scmp.le.s32.totalorder 1, %s11
    %p200 = scmp.lt.s32.totalorder %s11, 3
    %p201 = pnand %p199, %p200
    %p202 = pneg %p201
    // Predicated region
    $region37: #{graphsage_forward.2} parent=5 // pred_check
      _
    $region38: #{graphsage_forward.2} parent=5 // pred_check_branch
      %204 = sbr.rel (%p201) target = $region40
    $region39: #{graphsage_forward.2} parent=5 // pred_region
      %s205 = ssub.s32 %s11, 1
      %s206 = smul.u32 16, %s16
      %p207 = scmp.lt.s32.totalorder %s206, 31
      %s208 = scalar_select %p207, %s206, 31
      %s209 = smul.addr %s208, 2
      %s210 = smul.addr %s209, 4
      %s211 = scalar_lea.vmem %s0, %s210
      %p212 = pneg %p37
      %p213 = pneg %p34
      %p214 = pneg %p58
      %p215 = pneg %p55
      %s216 = smul.u32 16, %s16
      %p217 = scmp.lt.s32.totalorder %s216, 31
      %s218 = scalar_select %p217, %s216, 31
      %s219 = smul.addr %s218, 8
      %s220 = scalar_lea.vmem %s2, %s219
      %p221 = pneg %p84
      %p222 = pneg %p81
      %p223 = pneg %p105
      %p224 = pneg %p102
      %p225 = pneg %p126
      %p226 = pneg %p123
      %p227 = pneg %p152
      %p228 = pneg %p149
      %s229 = smul.u32 16, %s16
      %p230 = scmp.lt.s32.totalorder %s229, 31
      %s231 = scalar_select %p230, %s229, 31
      %s232 = smul.addr %s231, 4
      %s233 = scalar_lea.vmem %s5, %s232
      %s234 = smul.u32 16, %s16
      %p235 = scmp.lt.s32.totalorder %s234, 31
      %s236 = scalar_select %p235, %s234, 31
      %s237 = smul.addr %s236, 2
      %s238 = smul.addr %s237, 4
      %s239 = scalar_lea.vmem %s0, %s238
      %s240 = smul.u32 16, %s16
      %s241 = smul.u32 16, %s16
      %p242 = scmp.lt.s32.totalorder %s241, 31
      %s243 = scalar_select %p242, %s241, 31
      %s244 = smul.addr %s243, 8
      %s245 = scalar_lea.vmem %s2, %s244
      %s246 = smul.u32 16, %s16
      %s247 = smul.u32 16, %s16
      %p248 = scmp.lt.s32.totalorder %s247, 31
      %s249 = scalar_select %p248, %s247, 31
      %s250 = smul.addr %s249, 4
      %s251 = scalar_lea.vmem %s5, %s250
      %s252 = smul.u32 16, %s16
      %s254 = smul.u32 %s16, 128
      %v255 = vld [vmem:[%s239] sm:$0xff]
      %v256 = vld [vmem:[%s239 + $0x8] sm:$0xff]
      %v257 = vld [vmem:[%s239 + $0x10] sm:$0xff]
      %v258 = vld [vmem:[%s239 + $0x18] sm:$0xff]
      %v259 = vld [vmem:[%s239 + $0x20] sm:$0xff]
      %v260 = vld [vmem:[%s239 + $0x28] sm:$0xff]
      %v261 = vld [vmem:[%s239 + $0x30] sm:$0xff]
      %v262 = vld [vmem:[%s239 + $0x38] sm:$0xff]
      %v263 = vld [vmem:[%s239 + $0x40] sm:$0xff]
      %v264 = vld [vmem:[%s239 + $0x48] sm:$0xff]
      %v265 = vld [vmem:[%s239 + $0x50] sm:$0xff]
      %v266 = vld [vmem:[%s239 + $0x58] sm:$0xff]
      %v267 = vld [vmem:[%s239 + $0x60] sm:$0xff]
      %v268 = vld [vmem:[%s239 + $0x68] sm:$0xff]
      %v269 = vld [vmem:[%s239 + $0x70] sm:$0xff]
      %v270 = vld [vmem:[%s239 + $0x78] sm:$0xff]
      %v271 = vld [vmem:[%s1] sm:$0xf]
      %v272 = vld [vmem:[%s1 + $0x4] sm:$0xf]
      %v273 = vld [vmem:[%s1 + $0x8] sm:$0xf]
      %v274 = vld [vmem:[%s1 + $0xc] sm:$0xf]
      %v275 = vld [vmem:[%s1 + $0x10] sm:$0xf]
      %v276 = vld [vmem:[%s1 + $0x14] sm:$0xf]
      %v277 = vld [vmem:[%s1 + $0x18] sm:$0xf]
      %v278 = vld [vmem:[%s1 + $0x1c] sm:$0xf]
      %v279 = vld [vmem:[%s1 + $0x20] sm:$0xf]
      %v280 = vld [vmem:[%s1 + $0x24] sm:$0xf]
      %v281 = vld [vmem:[%s1 + $0x28] sm:$0xf]
      %v282 = vld [vmem:[%s1 + $0x2c] sm:$0xf]
      %v283 = vld [vmem:[%s1 + $0x30] sm:$0xf]
      %v284 = vld [vmem:[%s1 + $0x34] sm:$0xf]
      %v285 = vld [vmem:[%s1 + $0x38] sm:$0xf]
      %v286 = vld [vmem:[%s1 + $0x3c] sm:$0xf]
      %v287 = vld [vmem:[%s1 + $0x40] sm:$0xf]
      %v288 = vld [vmem:[%s1 + $0x44] sm:$0xf]
      %v289 = vld [vmem:[%s1 + $0x48] sm:$0xf]
      %v290 = vld [vmem:[%s1 + $0x4c] sm:$0xf]
      %v291 = vld [vmem:[%s1 + $0x50] sm:$0xf]
      %v292 = vld [vmem:[%s1 + $0x54] sm:$0xf]
      %v293 = vld [vmem:[%s1 + $0x58] sm:$0xf]
      %v294 = vld [vmem:[%s1 + $0x5c] sm:$0xf]
      %v295 = vld [vmem:[%s1 + $0x60] sm:$0xf]
      %v296 = vld [vmem:[%s1 + $0x64] sm:$0xf]
      %v297 = vld [vmem:[%s1 + $0x68] sm:$0xf]
      %v298 = vld [vmem:[%s1 + $0x6c] sm:$0xf]
      %v299 = vld [vmem:[%s1 + $0x70] sm:$0xf]
      %v300 = vld [vmem:[%s1 + $0x74] sm:$0xf]
      %v301 = vld [vmem:[%s1 + $0x78] sm:$0xf]
      %v302 = vld [vmem:[%s1 + $0x7c] sm:$0xf]
      %v319 = vunpack.c.l.b16 %v255
      %v320 = vunpack.c.h.b16 %v255
      %v321 = vunpack.c.l.b16 %v256
      %v322 = vunpack.c.h.b16 %v256
      %v323 = vunpack.c.l.b16 %v257
      %v324 = vunpack.c.h.b16 %v257
      %v325 = vunpack.c.l.b16 %v258
      %v326 = vunpack.c.h.b16 %v258
      %v327 = vunpack.c.l.b16 %v259
      %v328 = vunpack.c.h.b16 %v259
      %v329 = vunpack.c.l.b16 %v260
      %v330 = vunpack.c.h.b16 %v260
      %v331 = vunpack.c.l.b16 %v261
      %v332 = vunpack.c.h.b16 %v261
      %v333 = vunpack.c.l.b16 %v262
      %v334 = vunpack.c.h.b16 %v262
      %v335 = vunpack.c.l.b16 %v263
      %v336 = vunpack.c.h.b16 %v263
      %v337 = vunpack.c.l.b16 %v264
      %v338 = vunpack.c.h.b16 %v264
      %v339 = vunpack.c.l.b16 %v265
      %v340 = vunpack.c.h.b16 %v265
      %v341 = vunpack.c.l.b16 %v266
      %v342 = vunpack.c.h.b16 %v266
      %v343 = vunpack.c.l.b16 %v267
      %v344 = vunpack.c.h.b16 %v267
      %v345 = vunpack.c.l.b16 %v268
      %v346 = vunpack.c.h.b16 %v268
      %v347 = vunpack.c.l.b16 %v269
      %v348 = vunpack.c.h.b16 %v269
      %v349 = vunpack.c.l.b16 %v270
      %v350 = vunpack.c.h.b16 %v270
      %v351 = vpack.c.b16 %v321, %v319
      %v352 = vpack.c.b16 %v322, %v320
      %v353 = vpack.c.b16 %v325, %v323
      %v354 = vpack.c.b16 %v326, %v324
      %v355 = vpack.c.b16 %v329, %v327
      %v356 = vpack.c.b16 %v330, %v328
      %v357 = vpack.c.b16 %v333, %v331
      %v358 = vpack.c.b16 %v334, %v332
      %v359 = vpack.c.b16 %v337, %v335
      %v360 = vpack.c.b16 %v338, %v336
      %v361 = vpack.c.b16 %v341, %v339
      %v362 = vpack.c.b16 %v342, %v340
      %v363 = vpack.c.b16 %v345, %v343
      %v364 = vpack.c.b16 %v346, %v344
      %v365 = vpack.c.b16 %v349, %v347
      %v366 = vpack.c.b16 %v350, %v348
      %v415 = vunpack.c.l.b16 %v271
      %v416 = vunpack.c.l.b16 %v272
      %v417 = vunpack.c.l.b16 %v273
      %v418 = vunpack.c.l.b16 %v274
      %v419 = vunpack.c.l.b16 %v275
      %v420 = vunpack.c.l.b16 %v276
      %v421 = vunpack.c.l.b16 %v277
      %v422 = vunpack.c.l.b16 %v278
      %v423 = vunpack.c.l.b16 %v279
      %v424 = vunpack.c.l.b16 %v280
      %v425 = vunpack.c.l.b16 %v281
      %v426 = vunpack.c.l.b16 %v282
      %v427 = vunpack.c.l.b16 %v283
      %v428 = vunpack.c.l.b16 %v284
      %v429 = vunpack.c.l.b16 %v285
      %v430 = vunpack.c.l.b16 %v286
      %v431 = vunpack.c.l.b16 %v287
      %v432 = vunpack.c.l.b16 %v288
      %v433 = vunpack.c.l.b16 %v289
      %v434 = vunpack.c.l.b16 %v290
      %v435 = vunpack.c.l.b16 %v291
      %v436 = vunpack.c.l.b16 %v292
      %v437 = vunpack.c.l.b16 %v293
      %v438 = vunpack.c.l.b16 %v294
      %v439 = vunpack.c.l.b16 %v295
      %v440 = vunpack.c.l.b16 %v296
      %v441 = vunpack.c.l.b16 %v297
      %v442 = vunpack.c.l.b16 %v298
      %v443 = vunpack.c.l.b16 %v299
      %v444 = vunpack.c.l.b16 %v300
      %v445 = vunpack.c.l.b16 %v301
      %v446 = vunpack.c.l.b16 %v302
      %v447 = vpack.c.b16 %v416, %v415
      %v448 = vpack.c.b16 %v418, %v417
      %v449 = vpack.c.b16 %v420, %v419
      %v450 = vpack.c.b16 %v422, %v421
      %v451 = vpack.c.b16 %v424, %v423
      %v452 = vpack.c.b16 %v426, %v425
      %v453 = vpack.c.b16 %v428, %v427
      %v454 = vpack.c.b16 %v430, %v429
      %v455 = vpack.c.b16 %v432, %v431
      %v456 = vpack.c.b16 %v434, %v433
      %v457 = vpack.c.b16 %v436, %v435
      %v458 = vpack.c.b16 %v438, %v437
      %v459 = vpack.c.b16 %v440, %v439
      %v460 = vpack.c.b16 %v442, %v441
      %v461 = vpack.c.b16 %v444, %v443
      %v462 = vpack.c.b16 %v446, %v445
      %479 = vmatprep.subr.bf16.mxu0 0
      %480 = vmatpush1.bf16.msra.mxu0 %v447
      %481 = vmatprep.subr.bf16.mxu0 0
      %482 = vmatpush1.bf16.msra.mxu0 %v448
      %483 = vmatprep.subr.bf16.mxu0 0
      %484 = vmatpush1.bf16.msra.mxu0 %v449
      %485 = vmatprep.subr.bf16.mxu0 0
      %486 = vmatpush1.bf16.msra.mxu0 %v450
      %487 = vmatprep.subr.bf16.mxu0 0
      %488 = vmatpush1.bf16.msra.mxu0 %v451
      %489 = vmatprep.subr.bf16.mxu0 0
      %490 = vmatpush1.bf16.msra.mxu0 %v452
      %491 = vmatprep.subr.bf16.mxu0 0
      %492 = vmatpush1.bf16.msra.mxu0 %v453
      %493 = vmatprep.subr.bf16.mxu0 0
      %494 = vmatpush1.bf16.msra.mxu0 %v454
      %495 = vmatprep.subr.bf16.mxu0 0
      %496 = vmatpush1.bf16.msra.mxu0 %v455
      %497 = vmatprep.subr.bf16.mxu0 0
      %498 = vmatpush1.bf16.msra.mxu0 %v456
      %499 = vmatprep.subr.bf16.mxu0 0
      %500 = vmatpush1.bf16.msra.mxu0 %v457
      %501 = vmatprep.subr.bf16.mxu0 0
      %502 = vmatpush1.bf16.msra.mxu0 %v458
      %503 = vmatprep.subr.bf16.mxu0 0
      %504 = vmatpush1.bf16.msra.mxu0 %v459
      %505 = vmatprep.subr.bf16.mxu0 0
      %506 = vmatpush1.bf16.msra.mxu0 %v460
      %507 = vmatprep.subr.bf16.mxu0 0
      %508 = vmatpush1.bf16.msra.mxu0 %v461
      %509 = vmatprep.subr.bf16.mxu0 0
      %510 = vmatpush1.bf16.msra.mxu0 %v462
      %511 = vmatprep.mubr.bf16.mxu0 %v352
      %512 = vmatmul.mubr.bf16.gmra.mrb[0].mxu0 %v351
      %v513 = vpop.f32.mrb[0].mxu0
      %v514 = vadd.f32 0.0, %v513
      %v515 = vpop.f32.mrb[0].mxu0
      %v516 = vpop.f32.mrb[0].mxu0
      %v517 = vadd.f32 0.0, %v516
      %v518 = vpop.f32.mrb[0].mxu0
      %519 = vmatprep.mubr.bf16.mxu0 %v354
      %520 = vmatmul.mubr.bf16.gmra.mrb[0].mxu0 %v353
      %v521 = vpop.f32.mrb[0].mxu0
      %v522 = vadd.f32 0.0, %v521
      %v523 = vpop.f32.mrb[0].mxu0
      %v524 = vpop.f32.mrb[0].mxu0
      %v525 = vadd.f32 0.0, %v524
      %v526 = vpop.f32.mrb[0].mxu0
      %527 = vmatprep.mubr.bf16.mxu0 %v356
      %528 = vmatmul.mubr.bf16.gmra.mrb[0].mxu0 %v355
      %v529 = vpop.f32.mrb[0].mxu0
      %v530 = vadd.f32 0.0, %v529
      %v531 = vpop.f32.mrb[0].mxu0
      %v532 = vpop.f32.mrb[0].mxu0
      %v533 = vadd.f32 0.0, %v532
      %v534 = vpop.f32.mrb[0].mxu0
      %535 = vmatprep.mubr.bf16.mxu0 %v358
      %536 = vmatmul.mubr.bf16.gmra.mrb[0].mxu0 %v357
      %v537 = vpop.f32.mrb[0].mxu0
      %v538 = vadd.f32 0.0, %v537
      %v539 = vpop.f32.mrb[0].mxu0
      %v540 = vpop.f32.mrb[0].mxu0
      %v541 = vadd.f32 0.0, %v540
      %v542 = vpop.f32.mrb[0].mxu0
      %543 = vmatprep.mubr.bf16.mxu0 %v360
      %544 = vmatmul.mubr.bf16.gmra.mrb[0].mxu0 %v359
      %v545 = vpop.f32.mrb[0].mxu0
      %v546 = vadd.f32 0.0, %v545
      %v547 = vpop.f32.mrb[0].mxu0
      %v548 = vpop.f32.mrb[0].mxu0
      %v549 = vadd.f32 0.0, %v548
      %v550 = vpop.f32.mrb[0].mxu0
      %551 = vmatprep.mubr.bf16.mxu0 %v362
      %552 = vmatmul.mubr.bf16.gmra.mrb[0].mxu0 %v361
      %v553 = vpop.f32.mrb[0].mxu0
      %v554 = vadd.f32 0.0, %v553
      %v555 = vpop.f32.mrb[0].mxu0
      %v556 = vpop.f32.mrb[0].mxu0
      %v557 = vadd.f32 0.0, %v556
      %v558 = vpop.f32.mrb[0].mxu0
      %559 = vmatprep.mubr.bf16.mxu0 %v364
      %560 = vmatmul.mubr.bf16.gmra.mrb[0].mxu0 %v363
      %v561 = vpop.f32.mrb[0].mxu0
      %v562 = vadd.f32 0.0, %v561
      %v563 = vpop.f32.mrb[0].mxu0
      %v564 = vpop.f32.mrb[0].mxu0
      %v565 = vadd.f32 0.0, %v564
      %v566 = vpop.f32.mrb[0].mxu0
      %567 = vmatprep.mubr.bf16.mxu0 %v366
      %568 = vmatmul.mubr.bf16.gmra.mrb[0].mxu0 %v365
      %v569 = vpop.f32.mrb[0].mxu0
      %v570 = vadd.f32 0.0, %v569
      %v571 = vpop.f32.mrb[0].mxu0
      %v572 = vpop.f32.mrb[0].mxu0
      %v573 = vadd.f32 0.0, %v572
      %v574 = vpop.f32.mrb[0].mxu0
      %575 = vdwg.mxu0
      %s576 = sshra.s32 %s254, 3
      %s577 = sand.u32 %s254, 7
      %s578 = smul.addr %s576, 4
      %s579 = scalar_lea.vmem %s1, %s578
      %v580 = vld [vmem:[%s579] sm:$0xf]
      %v581 = vld [vmem:[%s579 + $0x4] sm:$0xf]
      %v582 = vld [vmem:[%s579 + $0x8] sm:$0xf]
      %v583 = vld [vmem:[%s579 + $0xc] sm:$0xf]
      %v584 = vld [vmem:[%s579 + $0x10] sm:$0xf]
      %v585 = vld [vmem:[%s579 + $0x14] sm:$0xf]
      %v586 = vld [vmem:[%s579 + $0x18] sm:$0xf]
      %v587 = vld [vmem:[%s579 + $0x1c] sm:$0xf]
      %v588 = vld [vmem:[%s579 + $0x20] sm:$0xf]
      %v589 = vld [vmem:[%s579 + $0x24] sm:$0xf]
      %v590 = vld [vmem:[%s579 + $0x28] sm:$0xf]
      %v591 = vld [vmem:[%s579 + $0x2c] sm:$0xf]
      %v592 = vld [vmem:[%s579 + $0x30] sm:$0xf]
      %v593 = vld [vmem:[%s579 + $0x34] sm:$0xf]
      %v594 = vld [vmem:[%s579 + $0x38] sm:$0xf]
      %v595 = vld [vmem:[%s579 + $0x3c] sm:$0xf]
      %v596 = vld [vmem:[%s245] sm:$0xff]
      %v597 = vld [vmem:[%s245 + $0x8] sm:$0xff]
      %v598 = vld [vmem:[%s245 + $0x10] sm:$0xff]
      %v599 = vld [vmem:[%s245 + $0x18] sm:$0xff]
      %v600 = vld [vmem:[%s245 + $0x20] sm:$0xff]
      %v601 = vld [vmem:[%s245 + $0x28] sm:$0xff]
      %v602 = vld [vmem:[%s245 + $0x30] sm:$0xff]
      %v603 = vld [vmem:[%s245 + $0x38] sm:$0xff]
      %v604 = vld [vmem:[%s245 + $0x40] sm:$0xff]
      %v605 = vld [vmem:[%s245 + $0x48] sm:$0xff]
      %v606 = vld [vmem:[%s245 + $0x50] sm:$0xff]
      %v607 = vld [vmem:[%s245 + $0x58] sm:$0xff]
      %v608 = vld [vmem:[%s245 + $0x60] sm:$0xff]
      %v609 = vld [vmem:[%s245 + $0x68] sm:$0xff]
      %v610 = vld [vmem:[%s245 + $0x70] sm:$0xff]
      %v611 = vld [vmem:[%s245 + $0x78] sm:$0xff]
      %613 = vset.pattern.permute.xlu0 0
      %614 = vperm.xlu0 %613, %v596
      %v615 = vpop.permute.xlu0 %614
      %618 = vset.pattern.permute.xlu0 0
      %619 = vperm.xlu0 %618, %v597
      %v620 = vpop.permute.xlu0 %619
      %623 = vset.pattern.permute.xlu0 0
      %624 = vperm.xlu0 %623, %v598
      %v625 = vpop.permute.xlu0 %624
      %628 = vset.pattern.permute.xlu0 0
      %629 = vperm.xlu0 %628, %v599
      %v630 = vpop.permute.xlu0 %629
      %633 = vset.pattern.permute.xlu0 0
      %634 = vperm.xlu0 %633, %v600
      %v635 = vpop.permute.xlu0 %634
      %638 = vset.pattern.permute.xlu0 0
      %639 = vperm.xlu0 %638, %v601
      %v640 = vpop.permute.xlu0 %639
      %643 = vset.pattern.permute.xlu0 0
      %644 = vperm.xlu0 %643, %v602
      %v645 = vpop.permute.xlu0 %644
      %648 = vset.pattern.permute.xlu0 0
      %649 = vperm.xlu0 %648, %v603
      %v650 = vpop.permute.xlu0 %649
      %653 = vset.pattern.permute.xlu0 0
      %654 = vperm.xlu0 %653, %v604
      %v655 = vpop.permute.xlu0 %654
      %658 = vset.pattern.permute.xlu0 0
      %659 = vperm.xlu0 %658, %v605
      %v660 = vpop.permute.xlu0 %659
      %663 = vset.pattern.permute.xlu0 0
      %664 = vperm.xlu0 %663, %v606
      %v665 = vpop.permute.xlu0 %664
      %668 = vset.pattern.permute.xlu0 0
      %669 = vperm.xlu0 %668, %v607
      %v670 = vpop.permute.xlu0 %669
      %673 = vset.pattern.permute.xlu0 0
      %674 = vperm.xlu0 %673, %v608
      %v675 = vpop.permute.xlu0 %674
      %678 = vset.pattern.permute.xlu0 0
      %679 = vperm.xlu0 %678, %v609
      %v680 = vpop.permute.xlu0 %679
      %683 = vset.pattern.permute.xlu0 0
      %684 = vperm.xlu0 %683, %v610
      %v685 = vpop.permute.xlu0 %684
      %688 = vset.pattern.permute.xlu0 0
      %689 = vperm.xlu0 %688, %v611
      %v690 = vpop.permute.xlu0 %689
      %v692 = vmul.f32 %v514, %v615
      %v693 = vmul.f32 %v517, %v620
      %v694 = vmul.f32 %v522, %v625
      %v695 = vmul.f32 %v525, %v630
      %v696 = vmul.f32 %v530, %v635
      %v697 = vmul.f32 %v533, %v640
      %v698 = vmul.f32 %v538, %v645
      %v699 = vmul.f32 %v541, %v650
      %v700 = vmul.f32 %v546, %v655
      %v701 = vmul.f32 %v549, %v660
      %v702 = vmul.f32 %v554, %v665
      %v703 = vmul.f32 %v557, %v670
      %v704 = vmul.f32 %v562, %v675
      %v705 = vmul.f32 %v565, %v680
      %v706 = vmul.f32 %v570, %v685
      %v707 = vmul.f32 %v573, %v690
      %v708 = vpack.c.bf16 %v693, %v692
      %v709 = vpack.c.bf16 %v695, %v694
      %v710 = vpack.c.bf16 %v697, %v696
      %v711 = vpack.c.bf16 %v699, %v698
      %v712 = vpack.c.bf16 %v701, %v700
      %v713 = vpack.c.bf16 %v703, %v702
      %v714 = vpack.c.bf16 %v705, %v704
      %v715 = vpack.c.bf16 %v707, %v706
      %v732 = vunpack.c.l.b16 %v580
      %v733 = vunpack.c.l.b16 %v581
      %v734 = vunpack.c.l.b16 %v582
      %v735 = vunpack.c.l.b16 %v583
      %v736 = vunpack.c.l.b16 %v584
      %v737 = vunpack.c.l.b16 %v585
      %v738 = vunpack.c.l.b16 %v586
      %v739 = vunpack.c.l.b16 %v587
      %v740 = vunpack.c.l.b16 %v588
      %v741 = vunpack.c.l.b16 %v589
      %v742 = vunpack.c.l.b16 %v590
      %v743 = vunpack.c.l.b16 %v591
      %v744 = vunpack.c.l.b16 %v592
      %v745 = vunpack.c.l.b16 %v593
      %v746 = vunpack.c.l.b16 %v594
      %v747 = vunpack.c.l.b16 %v595
      %v748 = vpack.c.b16 %v733, %v732
      %v749 = vpack.c.b16 %v735, %v734
      %v750 = vpack.c.b16 %v737, %v736
      %v751 = vpack.c.b16 %v739, %v738
      %v752 = vpack.c.b16 %v741, %v740
      %v753 = vpack.c.b16 %v743, %v742
      %v754 = vpack.c.b16 %v745, %v744
      %v755 = vpack.c.b16 %v747, %v746
      %v764 = vld [vmem:[%s3] sm:$0xf]
      %v765 = vld [vmem:[%s3 + $0x4] sm:$0xf]
      %v766 = vld [vmem:[%s3 + $0x8] sm:$0xf]
      %v767 = vld [vmem:[%s3 + $0xc] sm:$0xf]
      %v768 = vld [vmem:[%s3 + $0x10] sm:$0xf]
      %v769 = vld [vmem:[%s3 + $0x14] sm:$0xf]
      %v770 = vld [vmem:[%s3 + $0x18] sm:$0xf]
      %v771 = vld [vmem:[%s3 + $0x1c] sm:$0xf]
      %v772 = vld [vmem:[%s3 + $0x20] sm:$0xf]
      %v773 = vld [vmem:[%s3 + $0x24] sm:$0xf]
      %v774 = vld [vmem:[%s3 + $0x28] sm:$0xf]
      %v775 = vld [vmem:[%s3 + $0x2c] sm:$0xf]
      %v776 = vld [vmem:[%s3 + $0x30] sm:$0xf]
      %v777 = vld [vmem:[%s3 + $0x34] sm:$0xf]
      %v778 = vld [vmem:[%s3 + $0x38] sm:$0xf]
      %v779 = vld [vmem:[%s3 + $0x3c] sm:$0xf]
      %v780 = vld [vmem:[%s3 + $0x40] sm:$0xf]
      %v781 = vld [vmem:[%s3 + $0x44] sm:$0xf]
      %v782 = vld [vmem:[%s3 + $0x48] sm:$0xf]
      %v783 = vld [vmem:[%s3 + $0x4c] sm:$0xf]
      %v784 = vld [vmem:[%s3 + $0x50] sm:$0xf]
      %v785 = vld [vmem:[%s3 + $0x54] sm:$0xf]
      %v786 = vld [vmem:[%s3 + $0x58] sm:$0xf]
      %v787 = vld [vmem:[%s3 + $0x5c] sm:$0xf]
      %v788 = vld [vmem:[%s3 + $0x60] sm:$0xf]
      %v789 = vld [vmem:[%s3 + $0x64] sm:$0xf]
      %v790 = vld [vmem:[%s3 + $0x68] sm:$0xf]
      %v791 = vld [vmem:[%s3 + $0x6c] sm:$0xf]
      %v792 = vld [vmem:[%s3 + $0x70] sm:$0xf]
      %v793 = vld [vmem:[%s3 + $0x74] sm:$0xf]
      %v794 = vld [vmem:[%s3 + $0x78] sm:$0xf]
      %v795 = vld [vmem:[%s3 + $0x7c] sm:$0xf]
      %v796 = vld [vmem:[%s4] sm:$0x1]
      %v798 = vlaneseq
      %v799 = vshrl.u32 %v798, 7
      %v800 = vsub.s32 0, %v799
      %v801 = vrot.slane %v796, %v800
      %v835 = vunpack.c.l.b16 %v764
      %v836 = vunpack.c.l.b16 %v765
      %v837 = vunpack.c.l.b16 %v766
      %v838 = vunpack.c.l.b16 %v767
      %v839 = vunpack.c.l.b16 %v768
      %v840 = vunpack.c.l.b16 %v769
      %v841 = vunpack.c.l.b16 %v770
      %v842 = vunpack.c.l.b16 %v771
      %v843 = vunpack.c.l.b16 %v772
      %v844 = vunpack.c.l.b16 %v773
      %v845 = vunpack.c.l.b16 %v774
      %v846 = vunpack.c.l.b16 %v775
      %v847 = vunpack.c.l.b16 %v776
      %v848 = vunpack.c.l.b16 %v777
      %v849 = vunpack.c.l.b16 %v778
      %v850 = vunpack.c.l.b16 %v779
      %v851 = vunpack.c.l.b16 %v780
      %v852 = vunpack.c.l.b16 %v781
      %v853 = vunpack.c.l.b16 %v782
      %v854 = vunpack.c.l.b16 %v783
      %v855 = vunpack.c.l.b16 %v784
      %v856 = vunpack.c.l.b16 %v785
      %v857 = vunpack.c.l.b16 %v786
      %v858 = vunpack.c.l.b16 %v787
      %v859 = vunpack.c.l.b16 %v788
      %v860 = vunpack.c.l.b16 %v789
      %v861 = vunpack.c.l.b16 %v790
      %v862 = vunpack.c.l.b16 %v791
      %v863 = vunpack.c.l.b16 %v792
      %v864 = vunpack.c.l.b16 %v793
      %v865 = vunpack.c.l.b16 %v794
      %v866 = vunpack.c.l.b16 %v795
      %v867 = vpack.c.b16 %v836, %v835
      %v868 = vpack.c.b16 %v838, %v837
      %v869 = vpack.c.b16 %v840, %v839
      %v870 = vpack.c.b16 %v842, %v841
      %v871 = vpack.c.b16 %v844, %v843
      %v872 = vpack.c.b16 %v846, %v845
      %v873 = vpack.c.b16 %v848, %v847
      %v874 = vpack.c.b16 %v850, %v849
      %v875 = vpack.c.b16 %v852, %v851
      %v876 = vpack.c.b16 %v854, %v853
      %v877 = vpack.c.b16 %v856, %v855
      %v878 = vpack.c.b16 %v858, %v857
      %v879 = vpack.c.b16 %v860, %v859
      %v880 = vpack.c.b16 %v862, %v861
      %v881 = vpack.c.b16 %v864, %v863
      %v882 = vpack.c.b16 %v866, %v865
      %899 = vmatprep.subr.bf16.mxu0 0
      %900 = vmatpush1.bf16.msra.mxu0 %v867
      %901 = vmatprep.subr.bf16.mxu0 0
      %902 = vmatpush1.bf16.msra.mxu0 %v868
      %903 = vmatprep.subr.bf16.mxu0 0
      %904 = vmatpush1.bf16.msra.mxu0 %v869
      %905 = vmatprep.subr.bf16.mxu0 0
      %906 = vmatpush1.bf16.msra.mxu0 %v870
      %907 = vmatprep.subr.bf16.mxu0 0
      %908 = vmatpush1.bf16.msra.mxu0 %v871
      %909 = vmatprep.subr.bf16.mxu0 0
      %910 = vmatpush1.bf16.msra.mxu0 %v872
      %911 = vmatprep.subr.bf16.mxu0 0
      %912 = vmatpush1.bf16.msra.mxu0 %v873
      %913 = vmatprep.subr.bf16.mxu0 0
      %914 = vmatpush1.bf16.msra.mxu0 %v874
      %915 = vmatprep.subr.bf16.mxu0 0
      %916 = vmatpush1.bf16.msra.mxu0 %v875
      %917 = vmatprep.subr.bf16.mxu0 0
      %918 = vmatpush1.bf16.msra.mxu0 %v876
      %919 = vmatprep.subr.bf16.mxu0 0
      %920 = vmatpush1.bf16.msra.mxu0 %v877
      %921 = vmatprep.subr.bf16.mxu0 0
      %922 = vmatpush1.bf16.msra.mxu0 %v878
      %923 = vmatprep.subr.bf16.mxu0 0
      %924 = vmatpush1.bf16.msra.mxu0 %v879
      %925 = vmatprep.subr.bf16.mxu0 0
      %926 = vmatpush1.bf16.msra.mxu0 %v880
      %927 = vmatprep.subr.bf16.mxu0 0
      %928 = vmatpush1.bf16.msra.mxu0 %v881
      %929 = vmatprep.subr.bf16.mxu0 0
      %930 = vmatpush1.bf16.msra.mxu0 %v882
      %931 = vmatprep.mubr.bf16.mxu0 %v708
      %932 = vmatmul.mubr.bf16.gmra.mrb[0].mxu0 %v748
      %v933 = vpop.f32.mrb[0].mxu0
      %v934 = vadd.f32 %v801, %v933
      %v935 = vpop.f32.mrb[0].mxu0
      %v936 = vpop.f32.mrb[0].mxu0
      %v937 = vadd.f32 %v801, %v936
      %v938 = vpop.f32.mrb[0].mxu0
      %939 = vmatprep.mubr.bf16.mxu0 %v709
      %940 = vmatmul.mubr.bf16.gmra.mrb[0].mxu0 %v749
      %v941 = vpop.f32.mrb[0].mxu0
      %v942 = vadd.f32 %v801, %v941
      %v943 = vpop.f32.mrb[0].mxu0
      %v944 = vpop.f32.mrb[0].mxu0
      %v945 = vadd.f32 %v801, %v944
      %v946 = vpop.f32.mrb[0].mxu0
      %947 = vmatprep.mubr.bf16.mxu0 %v710
      %948 = vmatmul.mubr.bf16.gmra.mrb[0].mxu0 %v750
      %v949 = vpop.f32.mrb[0].mxu0
      %v950 = vadd.f32 %v801, %v949
      %v951 = vpop.f32.mrb[0].mxu0
      %v952 = vpop.f32.mrb[0].mxu0
      %v953 = vadd.f32 %v801, %v952
      %v954 = vpop.f32.mrb[0].mxu0
      %955 = vmatprep.mubr.bf16.mxu0 %v711
      %956 = vmatmul.mubr.bf16.gmra.mrb[0].mxu0 %v751
      %v957 = vpop.f32.mrb[0].mxu0
      %v958 = vadd.f32 %v801, %v957
      %v959 = vpop.f32.mrb[0].mxu0
      %v960 = vpop.f32.mrb[0].mxu0
      %v961 = vadd.f32 %v801, %v960
      %v962 = vpop.f32.mrb[0].mxu0
      %963 = vmatprep.mubr.bf16.mxu0 %v712
      %964 = vmatmul.mubr.bf16.gmra.mrb[0].mxu0 %v752
      %v965 = vpop.f32.mrb[0].mxu0
      %v966 = vadd.f32 %v801, %v965
      %v967 = vpop.f32.mrb[0].mxu0
      %v968 = vpop.f32.mrb[0].mxu0
      %v969 = vadd.f32 %v801, %v968
      %v970 = vpop.f32.mrb[0].mxu0
      %971 = vmatprep.mubr.bf16.mxu0 %v713
      %972 = vmatmul.mubr.bf16.gmra.mrb[0].mxu0 %v753
      %v973 = vpop.f32.mrb[0].mxu0
      %v974 = vadd.f32 %v801, %v973
      %v975 = vpop.f32.mrb[0].mxu0
      %v976 = vpop.f32.mrb[0].mxu0
      %v977 = vadd.f32 %v801, %v976
      %v978 = vpop.f32.mrb[0].mxu0
      %979 = vmatprep.mubr.bf16.mxu0 %v714
      %980 = vmatmul.mubr.bf16.gmra.mrb[0].mxu0 %v754
      %v981 = vpop.f32.mrb[0].mxu0
      %v982 = vadd.f32 %v801, %v981
      %v983 = vpop.f32.mrb[0].mxu0
      %v984 = vpop.f32.mrb[0].mxu0
      %v985 = vadd.f32 %v801, %v984
      %v986 = vpop.f32.mrb[0].mxu0
      %987 = vmatprep.mubr.bf16.mxu0 %v715
      %988 = vmatmul.mubr.bf16.gmra.mrb[0].mxu0 %v755
      %v989 = vpop.f32.mrb[0].mxu0
      %v990 = vadd.f32 %v801, %v989
      %v991 = vpop.f32.mrb[0].mxu0
      %v992 = vpop.f32.mrb[0].mxu0
      %v993 = vadd.f32 %v801, %v992
      %v994 = vpop.f32.mrb[0].mxu0
      %995 = vdwg.mxu0
      %v996 = vmax.f32 %v934, 0.0
      %v997 = vmax.f32 %v937, 0.0
      %v998 = vmax.f32 %v942, 0.0
      %v999 = vmax.f32 %v945, 0.0
      %v1000 = vmax.f32 %v950, 0.0
      %v1001 = vmax.f32 %v953, 0.0
      %v1002 = vmax.f32 %v958, 0.0
      %v1003 = vmax.f32 %v961, 0.0
      %v1004 = vmax.f32 %v966, 0.0
      %v1005 = vmax.f32 %v969, 0.0
      %v1006 = vmax.f32 %v974, 0.0
      %v1007 = vmax.f32 %v977, 0.0
      %v1008 = vmax.f32 %v982, 0.0
      %v1009 = vmax.f32 %v985, 0.0
      %v1010 = vmax.f32 %v990, 0.0
      %v1011 = vmax.f32 %v993, 0.0
      %v1012 = vpack.c.bf16 %v997, %v996
      %v1013 = vpack.c.bf16 %v999, %v998
      %v1014 = vpack.c.bf16 %v1001, %v1000
      %v1015 = vpack.c.bf16 %v1003, %v1002
      %v1016 = vpack.c.bf16 %v1005, %v1004
      %v1017 = vpack.c.bf16 %v1007, %v1006
      %v1018 = vpack.c.bf16 %v1009, %v1008
      %v1019 = vpack.c.bf16 %v1011, %v1010
      %v1028 = vunpack.c.l.b16 %v1012
      %v1029 = vunpack.c.h.b16 %v1012
      %v1030 = vunpack.c.l.b16 %v1013
      %v1031 = vunpack.c.h.b16 %v1013
      %v1032 = vunpack.c.l.b16 %v1014
      %v1033 = vunpack.c.h.b16 %v1014
      %v1034 = vunpack.c.l.b16 %v1015
      %v1035 = vunpack.c.h.b16 %v1015
      %v1036 = vunpack.c.l.b16 %v1016
      %v1037 = vunpack.c.h.b16 %v1016
      %v1038 = vunpack.c.l.b16 %v1017
      %v1039 = vunpack.c.h.b16 %v1017
      %v1040 = vunpack.c.l.b16 %v1018
      %v1041 = vunpack.c.h.b16 %v1018
      %v1042 = vunpack.c.l.b16 %v1019
      %v1043 = vunpack.c.h.b16 %v1019
      %v1044 = vpack.c.b16 %v1028, %v1028
      %v1045 = vpack.c.b16 %v1029, %v1029
      %v1046 = vpack.c.b16 %v1030, %v1030
      %v1047 = vpack.c.b16 %v1031, %v1031
      %v1048 = vpack.c.b16 %v1032, %v1032
      %v1049 = vpack.c.b16 %v1033, %v1033
      %v1050 = vpack.c.b16 %v1034, %v1034
      %v1051 = vpack.c.b16 %v1035, %v1035
      %v1052 = vpack.c.b16 %v1036, %v1036
      %v1053 = vpack.c.b16 %v1037, %v1037
      %v1054 = vpack.c.b16 %v1038, %v1038
      %v1055 = vpack.c.b16 %v1039, %v1039
      %v1056 = vpack.c.b16 %v1040, %v1040
      %v1057 = vpack.c.b16 %v1041, %v1041
      %v1058 = vpack.c.b16 %v1042, %v1042
      %v1059 = vpack.c.b16 %v1043, %v1043
      %1076 = vst [vmem:[%s251] sm:$0xf] %v1044
      %1077 = vst [vmem:[%s251 + $0x4] sm:$0xf] %v1045
      %1078 = vst [vmem:[%s251 + $0x8] sm:$0xf] %v1046
      %1079 = vst [vmem:[%s251 + $0xc] sm:$0xf] %v1047
      %1080 = vst [vmem:[%s251 + $0x10] sm:$0xf] %v1048
      %1081 = vst [vmem:[%s251 + $0x14] sm:$0xf] %v1049
      %1082 = vst [vmem:[%s251 + $0x18] sm:$0xf] %v1050
      %1083 = vst [vmem:[%s251 + $0x1c] sm:$0xf] %v1051
      %1084 = vst [vmem:[%s251 + $0x20] sm:$0xf] %v1052
      %1085 = vst [vmem:[%s251 + $0x24] sm:$0xf] %v1053
      %1086 = vst [vmem:[%s251 + $0x28] sm:$0xf] %v1054
      %1087 = vst [vmem:[%s251 + $0x2c] sm:$0xf] %v1055
      %1088 = vst [vmem:[%s251 + $0x30] sm:$0xf] %v1056
      %1089 = vst [vmem:[%s251 + $0x34] sm:$0xf] %v1057
      %1090 = vst [vmem:[%s251 + $0x38] sm:$0xf] %v1058
      %1091 = vst [vmem:[%s251 + $0x3c] sm:$0xf] %v1059
      %s1092 = smul.u32 16, %s16
      %p1093 = scmp.lt.s32.totalorder %s1092, 31
      %s1094 = scalar_select %p1093, %s1092, 31
      %s1095 = smul.addr %s1094, 4
      %s1096 = scalar_lea.vmem %s5, %s1095
      // Predicated region
      $region41: #{graphsage_forward.2} parent=39 // pred_check
        %p1097 = pneg %p149
      $region42: #{graphsage_forward.2} parent=39 // pred_check_branch
        %1099 = sbr.rel (%p1097) target = $region44
      $region43: #{graphsage_forward.2} parent=39 // pred_region
        %s1100 = smul.u32 16, %s16
      $region44: #{graphsage_forward.2} parent=39 // pred_fallthru
        _
    $region40: #{graphsage_forward.2} parent=5 // pred_fallthru
      _
    %p1101 = scmp.le.s32.totalorder 2, %s11
    // Predicated region
    $region45: #{graphsage_forward.2} parent=5 // pred_check
      %p1102 = pneg %p1101
    $region46: #{graphsage_forward.2} parent=5 // pred_check_branch
      %1104 = sbr.rel (%p1102) target = $region48
    $region47: #{graphsage_forward.2} parent=5 // pred_region
      %s1105 = ssub.s32 %s11, 2
      // Predicated region
      $region49: #{graphsage_forward.2} parent=47 // pred_check
        %p1106 = pneg %p155
      $region50: #{graphsage_forward.2} parent=47 // pred_check_branch
        %1108 = sbr.rel (%p1106) target = $region52
      $region51: #{graphsage_forward.2} parent=47 // pred_region
        %s1109 = smul.u32 16, %s17
        %p1110 = scmp.lt.s32.totalorder %s1109, 31
        %s1111 = scalar_select %p1110, %s1109, 31
        %s1112 = smul.addr %s1111, 4
        %s1113 = scalar_lea.vmem %s5, %s1112
      $region52: #{graphsage_forward.2} parent=47 // pred_fallthru
        _
    $region48: #{graphsage_forward.2} parent=5 // pred_fallthru
      _
  $region6: #{graphsage_forward.2} parent=0 // loop_footer
    %s15 = sadd.s32 1, %s11
  $region7: #{graphsage_forward.2} parent=0 // loop_footer_branch
    %10 = sbr.rel target = $region3
  $region8: #{graphsage_forward.2} parent=0 // loop_exit
    _

</llo_original>
